<compile_context>
chip_gen: v7x
topology: tpu7x:2x2x1
jax: 0.10.0
libtpu: 0.0.40
codegen_flags: <defaults>
</compile_context>

<pallas_src>
import functools

import jax
import jax.numpy as jnp
from jax.experimental import pallas as pl
from jax.experimental.pallas import tpu as pltpu


def paconv_kernel(geom_ref, feat_ref,
                  w0_ref, bn0_scale_ref, bn0_shift_ref,
                  w1_ref, b1_ref,
                  wb_ref, bn_scale_ref, bn_shift_ref,
                  out_ref, *, M, c_out):
    # geom_ref : (16, TP) f32   rows = [xyz(3), nrm(3), cnorm(3), ang(3), dist(1), pad(3)]
    # feat_ref : (C_in, TP) bf16
    # weights are resident (constant index_map), already transposed/column-ized.
    geom = geom_ref[...]
    xyz = geom[0:3, :]
    nrm = geom[3:6, :]
    cn = geom[6:9, :]
    ang = geom[9:12, :]
    dist = geom[12:13, :]

    # ---- geometric feature construction (14 real channels + 2 zero pad) ----
    norm_diff = nrm - cn
    norm_ed = jnp.sqrt(jnp.sum(norm_diff * norm_diff, axis=0, keepdims=True))
    xyz_ed = jnp.sqrt(jnp.sum(xyz * xyz, axis=0, keepdims=True))
    zeros2 = jnp.zeros_like(geom[0:2, :])
    x16 = jnp.concatenate(
        [xyz, xyz_ed, nrm, norm_diff, norm_ed, ang, zeros2], axis=0)   # (16, TP)
    inv_d = pl.reciprocal(1.0 + dist, approx=True)                     # EUP
    x16 = x16 * inv_d

    # ---- ScoreNet: 1x1 convs == (hidden,16)@(16,TP) and (M,hidden)@(hidden,TP) ----
    # Kept in f32: tiny FLOP share; feeds exp() so keep precision.
    h = jnp.dot(w0_ref[...], x16, preferred_element_type=jnp.float32)  # (hidden, TP)
    h = jnp.maximum(h * bn0_scale_ref[...] + bn0_shift_ref[...], 0.0)
    s = jnp.dot(w1_ref[...], h, preferred_element_type=jnp.float32) + b1_ref[...]  # (M, TP)

    # ---- softmax_one over M:  exp(s) / (1 + sum exp(s)), numerically stable ----
    m_max = jnp.maximum(jnp.max(s, axis=0, keepdims=True), 0.0)
    e = jnp.exp(s - m_max)
    denom = jnp.exp(-m_max) + jnp.sum(e, axis=0, keepdims=True)
    scores = e * pl.reciprocal(denom, approx=True)                     # (M, TP)

    # ---- weight-bank matmul (bf16 operands, f32 accumulation on the MXU) ----
    f = jnp.dot(wb_ref[...], feat_ref[...],
                preferred_element_type=jnp.float32)                    # (M*C_out, TP)

    # ---- score-weighted reduction over the M branches ----
    # Every operand here is full lane width (c_out sublanes x TP lanes), so the
    # unrolled loop is dense VPU work; it also avoids materializing an
    # (M*C_out, TP) broadcast temporary (vreg/VMEM pressure at large TP).
    acc = scores[0:1, :] * f[0:c_out, :]
    for m in range(1, M):
        acc = acc + scores[m:m + 1, :] * f[m * c_out:(m + 1) * c_out, :]

    # ---- folded BatchNorm affine + ReLU, lane-dense store ----
    out = acc * bn_scale_ref[...] + bn_shift_ref[...]
    out_ref[...] = jnp.maximum(out, 0.0)


def knn_paconv_forward(grouped_xyz, grouped_dist, grouped_norm, grouped_angle,
                       feature, params, *, M, tile_p=512):
    B, _, N, k = grouped_xyz.shape
    P = B * N * k
    c_in = feature.shape[1]
    c_out = params["bn_scale"].shape[0]
    hidden = params["w0"].shape[1]
    assert tile_p % 128 == 0, "tile_p must be a multiple of 128 (lane dim)"
    assert P % tile_p == 0, f"P={P} must be divisible by tile_p={tile_p}"

    def to_cp(x):  # (B, C, N, k) -> (C, P), P ordered (B, N, k) row-major
        return jnp.transpose(x, (1, 0, 2, 3)).reshape(x.shape[1], P)

    # center_norm = grouped_norm[..., :1].repeat(1,1,1,k)  (glue: gather of k=0)
    center_norm = jnp.broadcast_to(grouped_norm[..., :1], grouped_norm.shape)

    # One packed lane-dense geometry stream (16, P): 13 channels + 3 zero pad.
    geom = jnp.concatenate(
        [to_cp(grouped_xyz), to_cp(grouped_norm), to_cp(center_norm),
         to_cp(grouped_angle), grouped_dist.reshape(1, P),
         jnp.zeros((3, P), jnp.float32)], axis=0)
    # Feature stream in bf16 (halves its HBM traffic; feeds a bf16 MXU matmul).
    feat = to_cp(feature).astype(jnp.bfloat16)

    # ---- weight / BN-fold layout transforms (one-time, tiny) ----
    w0_t = jnp.concatenate(
        [params["w0"], jnp.zeros((2, hidden), params["w0"].dtype)], axis=0).T  # (hidden, 16)
    bn0_scale = params["bn0_scale"].reshape(hidden, 1)
    bn0_shift = params["bn0_shift"].reshape(hidden, 1)
    w1_t = params["w1"].T                                                      # (M, hidden)
    b1 = params["b1"].reshape(M, 1)
    wb_t = params["wb"].T.astype(jnp.bfloat16)                                 # (M*C_out, C_in)
    bn_scale = params["bn_scale"].reshape(c_out, 1)
    bn_shift = params["bn_shift"].reshape(c_out, 1)

    # Lane-dense streamed blocks; weights use a constant index_map (resident).
    # NOTE: if DMA is still exposed in a trace, add pipeline_mode=pl.Buffered(3)
    # to the two streamed specs below.
    stream = lambda c: pl.BlockSpec((c, tile_p), lambda i: (0, i))
    resident = lambda a: pl.BlockSpec(a.shape, lambda i: (0, 0))

    out_cp = pl.pallas_call(
        functools.partial(paconv_kernel, M=M, c_out=c_out),
        out_shape=jax.ShapeDtypeStruct((c_out, P), jnp.float32),
        grid=(P // tile_p,),
        in_specs=[stream(16), stream(c_in),
                  resident(w0_t), resident(bn0_scale), resident(bn0_shift),
                  resident(w1_t), resident(b1),
                  resident(wb_t), resident(bn_scale), resident(bn_shift)],
        out_specs=stream(c_out),
        compiler_params=pltpu.CompilerParams(dimension_semantics=("parallel",)),
    )(geom, feat, w0_t, bn0_scale, bn0_shift, w1_t, b1, wb_t, bn_scale, bn_shift)

    # (C_out, P) -> (C_out, B, N, k) -> (B, C_out, N, k)  (matches PyTorch NCHW)
    return jnp.transpose(out_cp.reshape(c_out, B, N, k), (1, 0, 2, 3))


def reference_forward(grouped_xyz, grouped_dist, grouped_norm, grouped_angle,
                      feature, params, M):
    """Pure-JAX f32 reference mirroring the PyTorch forward."""
    B, _, N, k = grouped_xyz.shape
    center_norm = jnp.broadcast_to(grouped_norm[..., :1], grouped_norm.shape)
    norm_diff = grouped_norm - center_norm
    norm_ed = jnp.linalg.norm(center_norm - grouped_norm, axis=1, keepdims=True)
    xyz_ed = jnp.linalg.norm(grouped_xyz, axis=1, keepdims=True)
    xyz = jnp.concatenate([grouped_xyz, xyz_ed, grouped_norm, norm_diff,
                           norm_ed, grouped_angle], axis=1)
    xyz = xyz / (1.0 + grouped_dist[:, None])
    x = jnp.transpose(xyz, (0, 2, 3, 1))                      # (B, N, k, 14)
    h = jnp.maximum(x @ params["w0"] * params["bn0_scale"]
                    + params["bn0_shift"], 0.0)
    s = h @ params["w1"] + params["b1"]
    # softmax_one = exp(s) / (1 + sum exp(s)), stable form
    m = jnp.maximum(jnp.max(s, axis=-1, keepdims=True), 0.0)
    e = jnp.exp(s - m)
    scores = e / (jnp.exp(-m) + jnp.sum(e, axis=-1, keepdims=True))
    feat = jnp.transpose(feature, (0, 2, 3, 1))               # (B, N, k, C_in)
    of = (feat @ params["wb"]).reshape(B, N, k, M, -1)
    of = jnp.einsum("bnkm,bnkmc->bnkc", scores, of)
    of = jnp.maximum(of * params["bn_scale"] + params["bn_shift"], 0.0)
    return jnp.transpose(of, (0, 3, 1, 2))


if __name__ == "__main__":
    # P = B*N*k = 2048 -> 4 grid steps at tile_p=512 (keeps both v7x TCs busy).
    B, N, k = 2, 64, 16
    C_in, C_out, M = 8, 16, 8
    hidden = 16
    eps = 1e-5

    key = jax.random.PRNGKey(0)
    ks = jax.random.split(key, 13)

    # ---- inputs (cat -> 14 channels => angle has 3 channels) ----
    grouped_xyz = jax.random.normal(ks[0], (B, 3, N, k), jnp.float32)
    grouped_dist = jnp.abs(jax.random.normal(ks[1], (B, N, k), jnp.float32))
    grouped_norm = jax.random.normal(ks[2], (B, 3, N, k), jnp.float32)
    grouped_angle = jax.random.normal(ks[3], (B, 3, N, k), jnp.float32)
    feature = jax.random.normal(ks[4], (B, C_in, N, k), jnp.float32)

    # ---- deterministic synthetic parameters ----
    # ScoreNet conv0: Conv2d(14, 16, 1, bias=False) stored transposed (14, hidden)
    w0 = jax.random.normal(ks[5], (14, hidden), jnp.float32) * (2.0 / 14) ** 0.5
    gamma0 = 1.0 + 0.1 * jax.random.normal(ks[6], (hidden,), jnp.float32)
    beta0 = 0.1 * jax.random.normal(ks[7], (hidden,), jnp.float32)
    bn0_scale = gamma0 / jnp.sqrt(1.0 + eps)   # running_mean=0, running_var=1
    bn0_shift = beta0

    # ScoreNet conv1: Conv2d(16, M, 1, bias=True) stored transposed (hidden, M)
    w1 = jax.random.normal(ks[8], (hidden, M), jnp.float32) * (2.0 / hidden) ** 0.5
    b1 = 0.1 * jax.random.normal(ks[9], (M,), jnp.float32)

    # WeightBank: (M, C_in, C_out) -> permute(1,0,2) -> (C_in, M*C_out)
    wb3 = jax.random.normal(ks[10], (M, C_in, C_out), jnp.float32) \
        * (2.0 / (C_in * C_out)) ** 0.5
    wb = jnp.transpose(wb3, (1, 0, 2)).reshape(C_in, M * C_out)

    # Output BatchNorm2d(C_out), inference-mode fold
    gamma = 1.0 + 0.1 * jax.random.normal(ks[11], (C_out,), jnp.float32)
    beta = 0.1 * jax.random.normal(ks[12], (C_out,), jnp.float32)
    bn_scale = gamma / jnp.sqrt(1.0 + eps)
    bn_shift = beta

    params = dict(w0=w0, bn0_scale=bn0_scale, bn0_shift=bn0_shift,
                  w1=w1, b1=b1, wb=wb, bn_scale=bn_scale, bn_shift=bn_shift)

    out = knn_paconv_forward(grouped_xyz, grouped_dist, grouped_norm,
                             grouped_angle, feature, params, M=M, tile_p=512)
    out = jax.block_until_ready(out)

    ref = reference_forward(grouped_xyz, grouped_dist, grouped_norm,
                            grouped_angle, feature, params, M)
    assert out.shape == (B, C_out, N, k), out.shape
    max_err = float(jnp.max(jnp.abs(out - ref)))
    # Tolerance loosened vs. the pure-f32 reference because the weight-bank
    # matmul uses bf16 operands and the two reciprocals use approx=True.
    assert jnp.allclose(out, ref, atol=2e-2, rtol=2e-2), max_err
    print("KERNEL_OK")
</pallas_src>

<mosaic_0001>
module attributes {stable_mosaic.version = 11 : i64} {
  func.func @paconv_kernel(%arg0: i32, %arg1: memref<16x512xf32, #tpu.memory_space<vmem>>, %arg2: memref<8x512xbf16, #tpu.memory_space<vmem>>, %arg3: memref<16x16xf32, #tpu.memory_space<vmem>>, %arg4: memref<16x1xf32, #tpu.memory_space<vmem>>, %arg5: memref<16x1xf32, #tpu.memory_space<vmem>>, %arg6: memref<8x16xf32, #tpu.memory_space<vmem>>, %arg7: memref<8x1xf32, #tpu.memory_space<vmem>>, %arg8: memref<128x8xbf16, #tpu.memory_space<vmem>>, %arg9: memref<16x1xf32, #tpu.memory_space<vmem>>, %arg10: memref<16x1xf32, #tpu.memory_space<vmem>>, %arg11: memref<16x512xf32, #tpu.memory_space<vmem>>) attributes {dimension_semantics = [#tpu.dimension_semantics<parallel>], iteration_bounds = array<i64: 4>, scalar_prefetch = 0 : i64, scratch_operands = 0 : i64, tpu.core_type = #tpu.core_type<tc>, window_params = [{transform_indices = @transform_0, window_bounds = array<i64: 16, 512>}, {transform_indices = @transform_1, window_bounds = array<i64: 8, 512>}, {pipeline_mode = #tpu.pipeline_mode<synchronous>, transform_indices = @transform_2, window_bounds = array<i64: 16, 16>}, {pipeline_mode = #tpu.pipeline_mode<synchronous>, transform_indices = @transform_3, window_bounds = array<i64: 16, 1>}, {pipeline_mode = #tpu.pipeline_mode<synchronous>, transform_indices = @transform_4, window_bounds = array<i64: 16, 1>}, {pipeline_mode = #tpu.pipeline_mode<synchronous>, transform_indices = @transform_5, window_bounds = array<i64: 8, 16>}, {pipeline_mode = #tpu.pipeline_mode<synchronous>, transform_indices = @transform_6, window_bounds = array<i64: 8, 1>}, {pipeline_mode = #tpu.pipeline_mode<synchronous>, transform_indices = @transform_7, window_bounds = array<i64: 128, 8>}, {pipeline_mode = #tpu.pipeline_mode<synchronous>, transform_indices = @transform_8, window_bounds = array<i64: 16, 1>}, {pipeline_mode = #tpu.pipeline_mode<synchronous>, transform_indices = @transform_9, window_bounds = array<i64: 16, 1>}, {transform_indices = @transform_10, window_bounds = array<i64: 16, 512>}]} {
    %c0 = arith.constant 0 : index
    %c0_0 = arith.constant 0 : index
    %0 = vector.load %arg1[%c0, %c0_0] : memref<16x512xf32, #tpu.memory_space<vmem>>, vector<16x512xf32>
    %1 = vector.extract_strided_slice %0 {offsets = [0, 0], sizes = [3, 512], strides = [1, 1]} : vector<16x512xf32> to vector<3x512xf32>
    %2 = vector.extract_strided_slice %0 {offsets = [3, 0], sizes = [3, 512], strides = [1, 1]} : vector<16x512xf32> to vector<3x512xf32>
    %3 = vector.extract_strided_slice %0 {offsets = [6, 0], sizes = [3, 512], strides = [1, 1]} : vector<16x512xf32> to vector<3x512xf32>
    %4 = vector.extract_strided_slice %0 {offsets = [9, 0], sizes = [3, 512], strides = [1, 1]} : vector<16x512xf32> to vector<3x512xf32>
    %5 = vector.extract_strided_slice %0 {offsets = [12, 0], sizes = [1, 512], strides = [1, 1]} : vector<16x512xf32> to vector<1x512xf32>
    %6 = arith.subf %2, %3 : vector<3x512xf32>
    %7 = arith.mulf %6, %6 : vector<3x512xf32>
    %cst = arith.constant dense<0.000000e+00> : vector<512xf32>
    %8 = vector.multi_reduction <add>, %7, %cst [0] : vector<3x512xf32> to vector<512xf32>
    %9 = vector.shape_cast %8 : vector<512xf32> to vector<1x512xf32>
    %10 = math.sqrt %9 : vector<1x512xf32>
    %11 = arith.mulf %1, %1 : vector<3x512xf32>
    %cst_1 = arith.constant dense<0.000000e+00> : vector<512xf32>
    %12 = vector.multi_reduction <add>, %11, %cst_1 [0] : vector<3x512xf32> to vector<512xf32>
    %13 = vector.shape_cast %12 : vector<512xf32> to vector<1x512xf32>
    %14 = math.sqrt %13 : vector<1x512xf32>
    %cst_2 = arith.constant 0.000000e+00 : f32
    %15 = vector.broadcast %cst_2 : f32 to vector<2x512xf32>
    %16 = tpu.concatenate %1, %14, %2, %6, %10, %4, %15 in 0 : vector<3x512xf32>, vector<1x512xf32>, vector<3x512xf32>, vector<3x512xf32>, vector<1x512xf32>, vector<3x512xf32>, vector<2x512xf32> -> vector<16x512xf32>
    %cst_3 = arith.constant 1.000000e+00 : f32
    %17 = vector.broadcast %cst_3 : f32 to vector<1x512xf32>
    %18 = arith.addf %17, %5 : vector<1x512xf32>
    %19 = tpu.reciprocal %18 {approx = true} : vector<1x512xf32> -> vector<1x512xf32>
    %20 = vector.broadcast %19 : vector<1x512xf32> to vector<16x512xf32>
    %21 = arith.mulf %16, %20 : vector<16x512xf32>
    %c0_4 = arith.constant 0 : index
    %c0_5 = arith.constant 0 : index
    %22 = vector.load %arg3[%c0_4, %c0_5] : memref<16x16xf32, #tpu.memory_space<vmem>>, vector<16x16xf32>
    %cst_6 = arith.constant dense<0.000000e+00> : vector<16x512xf32>
    %23 = tpu.matmul %22, %21, %cst_6 {dimension_numbers = #tpu.dot_dimension_numbers<[1], [0], [0], [1], [0, 0, 1, 1], [], []>} : vector<16x16xf32>, vector<16x512xf32>, vector<16x512xf32> -> vector<16x512xf32>
    %c0_7 = arith.constant 0 : index
    %c0_8 = arith.constant 0 : index
    %24 = vector.load %arg4[%c0_7, %c0_8] : memref<16x1xf32, #tpu.memory_space<vmem>>, vector<16x1xf32>
    %25 = vector.broadcast %24 : vector<16x1xf32> to vector<16x512xf32>
    %26 = arith.mulf %23, %25 : vector<16x512xf32>
    %c0_9 = arith.constant 0 : index
    %c0_10 = arith.constant 0 : index
    %27 = vector.load %arg5[%c0_9, %c0_10] : memref<16x1xf32, #tpu.memory_space<vmem>>, vector<16x1xf32>
    %28 = vector.broadcast %27 : vector<16x1xf32> to vector<16x512xf32>
    %29 = arith.addf %26, %28 : vector<16x512xf32>
    %cst_11 = arith.constant 0.000000e+00 : f32
    %30 = vector.broadcast %cst_11 : f32 to vector<16x512xf32>
    %31 = arith.maximumf %29, %30 : vector<16x512xf32>
    %c0_12 = arith.constant 0 : index
    %c0_13 = arith.constant 0 : index
    %32 = vector.load %arg6[%c0_12, %c0_13] : memref<8x16xf32, #tpu.memory_space<vmem>>, vector<8x16xf32>
    %cst_14 = arith.constant dense<0.000000e+00> : vector<8x512xf32>
    %33 = tpu.matmul %32, %31, %cst_14 {dimension_numbers = #tpu.dot_dimension_numbers<[1], [0], [0], [1], [0, 0, 1, 1], [], []>} : vector<8x16xf32>, vector<16x512xf32>, vector<8x512xf32> -> vector<8x512xf32>
    %c0_15 = arith.constant 0 : index
    %c0_16 = arith.constant 0 : index
    %34 = vector.load %arg7[%c0_15, %c0_16] : memref<8x1xf32, #tpu.memory_space<vmem>>, vector<8x1xf32>
    %35 = vector.broadcast %34 : vector<8x1xf32> to vector<8x512xf32>
    %36 = arith.addf %33, %35 : vector<8x512xf32>
    %cst_17 = arith.constant dense<0xFF800000> : vector<512xf32>
    %37 = vector.multi_reduction <maximumf>, %36, %cst_17 [0] : vector<8x512xf32> to vector<512xf32>
    %38 = vector.shape_cast %37 : vector<512xf32> to vector<1x512xf32>
    %cst_18 = arith.constant 0.000000e+00 : f32
    %39 = vector.broadcast %cst_18 : f32 to vector<1x512xf32>
    %40 = arith.maximumf %38, %39 : vector<1x512xf32>
    %41 = vector.broadcast %40 : vector<1x512xf32> to vector<8x512xf32>
    %42 = arith.subf %36, %41 : vector<8x512xf32>
    %43 = math.exp %42 : vector<8x512xf32>
    %cst_19 = arith.constant 0.000000e+00 : f32
    %44 = vector.broadcast %cst_19 : f32 to vector<1x512xf32>
    %45 = arith.subf %44, %40 : vector<1x512xf32>
    %46 = math.exp %45 : vector<1x512xf32>
    %cst_20 = arith.constant dense<0.000000e+00> : vector<512xf32>
    %47 = vector.multi_reduction <add>, %43, %cst_20 [0] : vector<8x512xf32> to vector<512xf32>
    %48 = vector.shape_cast %47 : vector<512xf32> to vector<1x512xf32>
    %49 = arith.addf %46, %48 : vector<1x512xf32>
    %50 = tpu.reciprocal %49 {approx = true} : vector<1x512xf32> -> vector<1x512xf32>
    %51 = vector.broadcast %50 : vector<1x512xf32> to vector<8x512xf32>
    %52 = arith.mulf %43, %51 : vector<8x512xf32>
    %c0_21 = arith.constant 0 : index
    %c0_22 = arith.constant 0 : index
    %53 = vector.load %arg8[%c0_21, %c0_22] : memref<128x8xbf16, #tpu.memory_space<vmem>>, vector<128x8xbf16>
    %c0_23 = arith.constant 0 : index
    %c0_24 = arith.constant 0 : index
    %54 = vector.load %arg2[%c0_23, %c0_24] : memref<8x512xbf16, #tpu.memory_space<vmem>>, vector<8x512xbf16>
    %cst_25 = arith.constant dense<0.000000e+00> : vector<128x512xf32>
    %55 = tpu.matmul %53, %54, %cst_25 {dimension_numbers = #tpu.dot_dimension_numbers<[1], [0], [0], [1], [0, 0, 1, 1], [], []>} : vector<128x8xbf16>, vector<8x512xbf16>, vector<128x512xf32> -> vector<128x512xf32>
    %56 = vector.extract_strided_slice %52 {offsets = [0, 0], sizes = [1, 512], strides = [1, 1]} : vector<8x512xf32> to vector<1x512xf32>
    %57 = vector.extract_strided_slice %55 {offsets = [0, 0], sizes = [16, 512], strides = [1, 1]} : vector<128x512xf32> to vector<16x512xf32>
    %58 = vector.broadcast %56 : vector<1x512xf32> to vector<16x512xf32>
    %59 = arith.mulf %58, %57 : vector<16x512xf32>
    %60 = vector.extract_strided_slice %52 {offsets = [1, 0], sizes = [1, 512], strides = [1, 1]} : vector<8x512xf32> to vector<1x512xf32>
    %61 = vector.extract_strided_slice %55 {offsets = [16, 0], sizes = [16, 512], strides = [1, 1]} : vector<128x512xf32> to vector<16x512xf32>
    %62 = vector.broadcast %60 : vector<1x512xf32> to vector<16x512xf32>
    %63 = arith.mulf %62, %61 : vector<16x512xf32>
    %64 = arith.addf %59, %63 : vector<16x512xf32>
    %65 = vector.extract_strided_slice %52 {offsets = [2, 0], sizes = [1, 512], strides = [1, 1]} : vector<8x512xf32> to vector<1x512xf32>
    %66 = vector.extract_strided_slice %55 {offsets = [32, 0], sizes = [16, 512], strides = [1, 1]} : vector<128x512xf32> to vector<16x512xf32>
    %67 = vector.broadcast %65 : vector<1x512xf32> to vector<16x512xf32>
    %68 = arith.mulf %67, %66 : vector<16x512xf32>
    %69 = arith.addf %64, %68 : vector<16x512xf32>
    %70 = vector.extract_strided_slice %52 {offsets = [3, 0], sizes = [1, 512], strides = [1, 1]} : vector<8x512xf32> to vector<1x512xf32>
    %71 = vector.extract_strided_slice %55 {offsets = [48, 0], sizes = [16, 512], strides = [1, 1]} : vector<128x512xf32> to vector<16x512xf32>
    %72 = vector.broadcast %70 : vector<1x512xf32> to vector<16x512xf32>
    %73 = arith.mulf %72, %71 : vector<16x512xf32>
    %74 = arith.addf %69, %73 : vector<16x512xf32>
    %75 = vector.extract_strided_slice %52 {offsets = [4, 0], sizes = [1, 512], strides = [1, 1]} : vector<8x512xf32> to vector<1x512xf32>
    %76 = vector.extract_strided_slice %55 {offsets = [64, 0], sizes = [16, 512], strides = [1, 1]} : vector<128x512xf32> to vector<16x512xf32>
    %77 = vector.broadcast %75 : vector<1x512xf32> to vector<16x512xf32>
    %78 = arith.mulf %77, %76 : vector<16x512xf32>
    %79 = arith.addf %74, %78 : vector<16x512xf32>
    %80 = vector.extract_strided_slice %52 {offsets = [5, 0], sizes = [1, 512], strides = [1, 1]} : vector<8x512xf32> to vector<1x512xf32>
    %81 = vector.extract_strided_slice %55 {offsets = [80, 0], sizes = [16, 512], strides = [1, 1]} : vector<128x512xf32> to vector<16x512xf32>
    %82 = vector.broadcast %80 : vector<1x512xf32> to vector<16x512xf32>
    %83 = arith.mulf %82, %81 : vector<16x512xf32>
    %84 = arith.addf %79, %83 : vector<16x512xf32>
    %85 = vector.extract_strided_slice %52 {offsets = [6, 0], sizes = [1, 512], strides = [1, 1]} : vector<8x512xf32> to vector<1x512xf32>
    %86 = vector.extract_strided_slice %55 {offsets = [96, 0], sizes = [16, 512], strides = [1, 1]} : vector<128x512xf32> to vector<16x512xf32>
    %87 = vector.broadcast %85 : vector<1x512xf32> to vector<16x512xf32>
    %88 = arith.mulf %87, %86 : vector<16x512xf32>
    %89 = arith.addf %84, %88 : vector<16x512xf32>
    %90 = vector.extract_strided_slice %52 {offsets = [7, 0], sizes = [1, 512], strides = [1, 1]} : vector<8x512xf32> to vector<1x512xf32>
    %91 = vector.extract_strided_slice %55 {offsets = [112, 0], sizes = [16, 512], strides = [1, 1]} : vector<128x512xf32> to vector<16x512xf32>
    %92 = vector.broadcast %90 : vector<1x512xf32> to vector<16x512xf32>
    %93 = arith.mulf %92, %91 : vector<16x512xf32>
    %94 = arith.addf %89, %93 : vector<16x512xf32>
    %c0_26 = arith.constant 0 : index
    %c0_27 = arith.constant 0 : index
    %95 = vector.load %arg9[%c0_26, %c0_27] : memref<16x1xf32, #tpu.memory_space<vmem>>, vector<16x1xf32>
    %96 = vector.broadcast %95 : vector<16x1xf32> to vector<16x512xf32>
    %97 = arith.mulf %94, %96 : vector<16x512xf32>
    %c0_28 = arith.constant 0 : index
    %c0_29 = arith.constant 0 : index
    %98 = vector.load %arg10[%c0_28, %c0_29] : memref<16x1xf32, #tpu.memory_space<vmem>>, vector<16x1xf32>
    %99 = vector.broadcast %98 : vector<16x1xf32> to vector<16x512xf32>
    %100 = arith.addf %97, %99 : vector<16x512xf32>
    %cst_30 = arith.constant 0.000000e+00 : f32
    %101 = vector.broadcast %cst_30 : f32 to vector<16x512xf32>
    %102 = arith.maximumf %100, %101 : vector<16x512xf32>
    %c0_31 = arith.constant 0 : index
    %c0_32 = arith.constant 0 : index
    %103 = vector.load %arg11[%c0_31, %c0_32] : memref<16x512xf32, #tpu.memory_space<vmem>>, vector<16x512xf32>
    tpu.vector_store %arg11[%c0_31, %c0_32], %102 {strides = array<i32>} : memref<16x512xf32, #tpu.memory_space<vmem>>, vector<16x512xf32>,
    return
  }
  func.func @transform_0(%arg0: i32) -> (i32, i32) {
    %c0_i32 = arith.constant 0 : i32
    %c0_i32_0 = arith.constant 0 : i32
    return %c0_i32, %arg0 : i32, i32
  }
  func.func @transform_1(%arg0: i32) -> (i32, i32) {
    %c0_i32 = arith.constant 0 : i32
    %c0_i32_0 = arith.constant 0 : i32
    return %c0_i32, %arg0 : i32, i32
  }
  func.func @transform_2(%arg0: i32) -> (i32, i32) {
    %c0_i32 = arith.constant 0 : i32
    %c0_i32_0 = arith.constant 0 : i32
    %c0_i32_1 = arith.constant 0 : i32
    return %c0_i32, %c0_i32_0 : i32, i32
  }
  func.func @transform_3(%arg0: i32) -> (i32, i32) {
    %c0_i32 = arith.constant 0 : i32
    %c0_i32_0 = arith.constant 0 : i32
    %c0_i32_1 = arith.constant 0 : i32
    return %c0_i32, %c0_i32_0 : i32, i32
  }
  func.func @transform_4(%arg0: i32) -> (i32, i32) {
    %c0_i32 = arith.constant 0 : i32
    %c0_i32_0 = arith.constant 0 : i32
    %c0_i32_1 = arith.constant 0 : i32
    return %c0_i32, %c0_i32_0 : i32, i32
  }
  func.func @transform_5(%arg0: i32) -> (i32, i32) {
    %c0_i32 = arith.constant 0 : i32
    %c0_i32_0 = arith.constant 0 : i32
    %c0_i32_1 = arith.constant 0 : i32
    return %c0_i32, %c0_i32_0 : i32, i32
  }
  func.func @transform_6(%arg0: i32) -> (i32, i32) {
    %c0_i32 = arith.constant 0 : i32
    %c0_i32_0 = arith.constant 0 : i32
    %c0_i32_1 = arith.constant 0 : i32
    return %c0_i32, %c0_i32_0 : i32, i32
  }
  func.func @transform_7(%arg0: i32) -> (i32, i32) {
    %c0_i32 = arith.constant 0 : i32
    %c0_i32_0 = arith.constant 0 : i32
    %c0_i32_1 = arith.constant 0 : i32
    return %c0_i32, %c0_i32_0 : i32, i32
  }
  func.func @transform_8(%arg0: i32) -> (i32, i32) {
    %c0_i32 = arith.constant 0 : i32
    %c0_i32_0 = arith.constant 0 : i32
    %c0_i32_1 = arith.constant 0 : i32
    return %c0_i32, %c0_i32_0 : i32, i32
  }
  func.func @transform_9(%arg0: i32) -> (i32, i32) {
    %c0_i32 = arith.constant 0 : i32
    %c0_i32_0 = arith.constant 0 : i32
    %c0_i32_1 = arith.constant 0 : i32
    return %c0_i32, %c0_i32_0 : i32, i32
  }
  func.func @transform_10(%arg0: i32) -> (i32, i32) {
    %c0_i32 = arith.constant 0 : i32
    %c0_i32_0 = arith.constant 0 : i32
    return %c0_i32, %arg0 : i32, i32
  }
}

</mosaic_0001>

<llo_original>
// kernel: tpu_custom_call.1
$region0: #{tpu_custom_call.1}
  #allocation0 [shape = 'u32[]', space=smem, size = 0x4, offset = 0x4, fixed_abs, tag = 'smem constant byte address 0x4 - core index']
  #allocation1 [shape = 'u32[144,128]{1,0:T(1,128)}', space=vmem, size = 0x12000, scoped, tag = 'internal scratch']
  %s0 = inlined_call_operand.hbm [shape: f32[16,2048], index: 0, kind: input, shape index: {}]
  %s1 = inlined_call_operand.vmem [shape: bf16[8,2048], index: 1, kind: input, shape index: {}]
  %s2 = inlined_call_operand.vmem [shape: f32[16,16], index: 2, kind: input, shape index: {}]
  %s3 = inlined_call_operand.vmem [shape: f32[16,1], index: 3, kind: input, shape index: {}]
  %s4 = inlined_call_operand.vmem [shape: f32[16,1], index: 4, kind: input, shape index: {}]
  %s5 = inlined_call_operand.vmem [shape: f32[8,16], index: 5, kind: input, shape index: {}]
  %s6 = inlined_call_operand.vmem [shape: f32[8,1], index: 6, kind: input, shape index: {}]
  %s7 = inlined_call_operand.vmem [shape: bf16[128,8], index: 7, kind: input, shape index: {}]
  %s8 = inlined_call_operand.vmem [shape: f32[16,1], index: 8, kind: input, shape index: {}]
  %s9 = inlined_call_operand.vmem [shape: f32[16,1], index: 9, kind: input, shape index: {}]
  %s10 = inlined_call_operand.hbm [shape: f32[16,2048], index: 10, kind: output, shape index: {}]
  %s11 = sld [smem:[#allocation0]]
  $region77: #{tpu_custom_call.1} parent=0
    _
  %s13 = ssub.s32 1, %s11
  %s14 = scalar_select 0, %s13, %s11
  $region1: #{tpu_custom_call.1} parent=0
    #allocation2 [shape = 'u8[65536]{0}', space=vmem, size = 0x10000, scoped, tag = 'input window, operand 0']
    #allocation3 [shape = 's32[2]{0}', space=sflag, size = 0x8, scoped, tag = 'scoped memory for tpu_custom_call.1']
    #allocation4 [shape = 's32[2]{0}', space=sflag, size = 0x8, scoped, tag = 'scoped memory for tpu_custom_call.1']
    #allocation5 [shape = 'u8[65536]{0}', space=vmem, size = 0x10000, scoped, tag = 'output window, operand 0']
    %15 = vsyncpa [#allocation3], 0
    %s16 = scalar_lea.sflag [#allocation3], 1
    %17 = vsyncpa %s16, 0
    %18 = vsyncpa [#allocation4], 0
    %s19 = scalar_lea.sflag [#allocation4], 1
    %20 = vsyncpa %s19, 0
    loop: start=0, step=1, limit=6
    $region2: #{tpu_custom_call.1} parent=1 // loop_pre_header
      _
    $region3: #{tpu_custom_call.1} parent=1 // loop_header
      %s22 = sphi 0, %s26
      %p23 = scmp.ge.s32.totalorder %s22, 6
      %s32 = sphi 0, %s34
      %s35 = sphi 0, %s32
      %s36 = sphi 0, %s35
      %s52 = sphi 0, %s36
      %s58 = sphi 0, %s60
      %s61 = sphi 0, %s58
      %s62 = sphi 0, %s61
      %s78 = sphi 0, %s62
      %s82 = sphi 0, %s82
      %s84 = sphi 0, %s82
      %s85 = sphi 0, %s84
      %s99 = sphi 0, %s85
      %s103 = sphi 0, %s103
      %s105 = sphi 0, %s103
      %s106 = sphi 0, %s105
      %s120 = sphi 0, %s106
      %s124 = sphi 0, %s124
      %s126 = sphi 0, %s124
      %s127 = sphi 0, %s126
      %s141 = sphi 0, %s127
      %s145 = sphi 0, %s145
      %s147 = sphi 0, %s145
      %s148 = sphi 0, %s147
      %s162 = sphi 0, %s148
      %s166 = sphi 0, %s166
      %s168 = sphi 0, %s166
      %s169 = sphi 0, %s168
      %s183 = sphi 0, %s169
      %s187 = sphi 0, %s187
      %s189 = sphi 0, %s187
      %s190 = sphi 0, %s189
      %s204 = sphi 0, %s190
      %s208 = sphi 0, %s208
      %s210 = sphi 0, %s208
      %s211 = sphi 0, %s210
      %s225 = sphi 0, %s211
      %s229 = sphi 0, %s229
      %s231 = sphi 0, %s229
      %s232 = sphi 0, %s231
      %s246 = sphi 0, %s232
      %s252 = sphi 0, %s254
      %s255 = sphi 0, %s252
      %s256 = sphi 0, %s255
      %s272 = sphi 0, %s256
    $region4: #{tpu_custom_call.1} parent=1 // loop_header_branch
      %25 = sbr.rel (%p23) target = $region8
    $region5: #{tpu_custom_call.1} parent=1 // loop_body
      %s27 = ssub.s32 %s22, 1
      %s28 = ssub.s32 %s22, 2
      %s29 = sadd.s32 %s22, 1
      %s30 = ssub.s32 %s22, %s29
      %p31 = scmp.eq.s32.totalorder %s30, 0
      %s33 = sadd.s32 %s32, 1
      %s34 = scalar_select %p31, %s32, %s33
      %p37 = pneg %p31
      %p38 = scmp.eq.s32.totalorder %s22, 3
      %p39 = por %p37, %p38
      %p40 = scmp.ne.s32.totalorder %s32, %s35
      %p41 = scmp.eq.s32.totalorder %s22, 0
      %p42 = por %p40, %p41
      %p43 = scmp.ne.s32.totalorder %s32, %s35
      %p44 = scmp.eq.s32.totalorder %s27, 3
      %p45 = por %p43, %p44
      %p46 = scmp.ne.s32.totalorder %s35, %s36
      %p47 = scmp.eq.s32.totalorder %s27, 0
      %p48 = por %p46, %p47
      %p49 = scmp.ne.s32.totalorder %s35, %s36
      %p50 = scmp.eq.s32.totalorder %s28, 3
      %p51 = por %p49, %p50
      %p53 = scmp.ne.s32.totalorder %s36, %s52
      %p54 = scmp.eq.s32.totalorder %s28, 0
      %p55 = por %p53, %p54
      %s56 = ssub.s32 %s22, %s29
      %p57 = scmp.eq.s32.totalorder %s56, 0
      %s59 = sadd.s32 %s58, 1
      %s60 = scalar_select %p57, %s58, %s59
      %p63 = pneg %p57
      %p64 = scmp.eq.s32.totalorder %s22, 3
      %p65 = por %p63, %p64
      %p66 = scmp.ne.s32.totalorder %s58, %s61
      %p67 = scmp.eq.s32.totalorder %s22, 0
      %p68 = por %p66, %p67
      %p69 = scmp.ne.s32.totalorder %s58, %s61
      %p70 = scmp.eq.s32.totalorder %s27, 3
      %p71 = por %p69, %p70
      %p72 = scmp.ne.s32.totalorder %s61, %s62
      %p73 = scmp.eq.s32.totalorder %s27, 0
      %p74 = por %p72, %p73
      %p75 = scmp.ne.s32.totalorder %s61, %s62
      %p76 = scmp.eq.s32.totalorder %s28, 3
      %p77 = por %p75, %p76
      %p79 = scmp.ne.s32.totalorder %s62, %s78
      %p80 = scmp.eq.s32.totalorder %s28, 0
      %p81 = por %p79, %p80
      %s83 = sadd.s32 %s82, 1
      %p86 = scmp.eq.s32.totalorder %s22, 3
      %p87 = scmp.ne.s32.totalorder %s82, %s84
      %p88 = scmp.eq.s32.totalorder %s22, 0
      %p89 = por %p87, %p88
      %p90 = scmp.ne.s32.totalorder %s82, %s84
      %p91 = scmp.eq.s32.totalorder %s27, 3
      %p92 = por %p90, %p91
      %p93 = scmp.ne.s32.totalorder %s84, %s85
      %p94 = scmp.eq.s32.totalorder %s27, 0
      %p95 = por %p93, %p94
      %p96 = scmp.ne.s32.totalorder %s84, %s85
      %p97 = scmp.eq.s32.totalorder %s28, 3
      %p98 = por %p96, %p97
      %p100 = scmp.ne.s32.totalorder %s85, %s99
      %p101 = scmp.eq.s32.totalorder %s28, 0
      %p102 = por %p100, %p101
      %s104 = sadd.s32 %s103, 1
      %p107 = scmp.eq.s32.totalorder %s22, 3
      %p108 = scmp.ne.s32.totalorder %s103, %s105
      %p109 = scmp.eq.s32.totalorder %s22, 0
      %p110 = por %p108, %p109
      %p111 = scmp.ne.s32.totalorder %s103, %s105
      %p112 = scmp.eq.s32.totalorder %s27, 3
      %p113 = por %p111, %p112
      %p114 = scmp.ne.s32.totalorder %s105, %s106
      %p115 = scmp.eq.s32.totalorder %s27, 0
      %p116 = por %p114, %p115
      %p117 = scmp.ne.s32.totalorder %s105, %s106
      %p118 = scmp.eq.s32.totalorder %s28, 3
      %p119 = por %p117, %p118
      %p121 = scmp.ne.s32.totalorder %s106, %s120
      %p122 = scmp.eq.s32.totalorder %s28, 0
      %p123 = por %p121, %p122
      %s125 = sadd.s32 %s124, 1
      %p128 = scmp.eq.s32.totalorder %s22, 3
      %p129 = scmp.ne.s32.totalorder %s124, %s126
      %p130 = scmp.eq.s32.totalorder %s22, 0
      %p131 = por %p129, %p130
      %p132 = scmp.ne.s32.totalorder %s124, %s126
      %p133 = scmp.eq.s32.totalorder %s27, 3
      %p134 = por %p132, %p133
      %p135 = scmp.ne.s32.totalorder %s126, %s127
      %p136 = scmp.eq.s32.totalorder %s27, 0
      %p137 = por %p135, %p136
      %p138 = scmp.ne.s32.totalorder %s126, %s127
      %p139 = scmp.eq.s32.totalorder %s28, 3
      %p140 = por %p138, %p139
      %p142 = scmp.ne.s32.totalorder %s127, %s141
      %p143 = scmp.eq.s32.totalorder %s28, 0
      %p144 = por %p142, %p143
      %s146 = sadd.s32 %s145, 1
      %p149 = scmp.eq.s32.totalorder %s22, 3
      %p150 = scmp.ne.s32.totalorder %s145, %s147
      %p151 = scmp.eq.s32.totalorder %s22, 0
      %p152 = por %p150, %p151
      %p153 = scmp.ne.s32.totalorder %s145, %s147
      %p154 = scmp.eq.s32.totalorder %s27, 3
      %p155 = por %p153, %p154
      %p156 = scmp.ne.s32.totalorder %s147, %s148
      %p157 = scmp.eq.s32.totalorder %s27, 0
      %p158 = por %p156, %p157
      %p159 = scmp.ne.s32.totalorder %s147, %s148
      %p160 = scmp.eq.s32.totalorder %s28, 3
      %p161 = por %p159, %p160
      %p163 = scmp.ne.s32.totalorder %s148, %s162
      %p164 = scmp.eq.s32.totalorder %s28, 0
      %p165 = por %p163, %p164
      %s167 = sadd.s32 %s166, 1
      %p170 = scmp.eq.s32.totalorder %s22, 3
      %p171 = scmp.ne.s32.totalorder %s166, %s168
      %p172 = scmp.eq.s32.totalorder %s22, 0
      %p173 = por %p171, %p172
      %p174 = scmp.ne.s32.totalorder %s166, %s168
      %p175 = scmp.eq.s32.totalorder %s27, 3
      %p176 = por %p174, %p175
      %p177 = scmp.ne.s32.totalorder %s168, %s169
      %p178 = scmp.eq.s32.totalorder %s27, 0
      %p179 = por %p177, %p178
      %p180 = scmp.ne.s32.totalorder %s168, %s169
      %p181 = scmp.eq.s32.totalorder %s28, 3
      %p182 = por %p180, %p181
      %p184 = scmp.ne.s32.totalorder %s169, %s183
      %p185 = scmp.eq.s32.totalorder %s28, 0
      %p186 = por %p184, %p185
      %s188 = sadd.s32 %s187, 1
      %p191 = scmp.eq.s32.totalorder %s22, 3
      %p192 = scmp.ne.s32.totalorder %s187, %s189
      %p193 = scmp.eq.s32.totalorder %s22, 0
      %p194 = por %p192, %p193
      %p195 = scmp.ne.s32.totalorder %s187, %s189
      %p196 = scmp.eq.s32.totalorder %s27, 3
      %p197 = por %p195, %p196
      %p198 = scmp.ne.s32.totalorder %s189, %s190
      %p199 = scmp.eq.s32.totalorder %s27, 0
      %p200 = por %p198, %p199
      %p201 = scmp.ne.s32.totalorder %s189, %s190
      %p202 = scmp.eq.s32.totalorder %s28, 3
      %p203 = por %p201, %p202
      %p205 = scmp.ne.s32.totalorder %s190, %s204
      %p206 = scmp.eq.s32.totalorder %s28, 0
      %p207 = por %p205, %p206
      %s209 = sadd.s32 %s208, 1
      %p212 = scmp.eq.s32.totalorder %s22, 3
      %p213 = scmp.ne.s32.totalorder %s208, %s210
      %p214 = scmp.eq.s32.totalorder %s22, 0
      %p215 = por %p213, %p214
      %p216 = scmp.ne.s32.totalorder %s208, %s210
      %p217 = scmp.eq.s32.totalorder %s27, 3
      %p218 = por %p216, %p217
      %p219 = scmp.ne.s32.totalorder %s210, %s211
      %p220 = scmp.eq.s32.totalorder %s27, 0
      %p221 = por %p219, %p220
      %p222 = scmp.ne.s32.totalorder %s210, %s211
      %p223 = scmp.eq.s32.totalorder %s28, 3
      %p224 = por %p222, %p223
      %p226 = scmp.ne.s32.totalorder %s211, %s225
      %p227 = scmp.eq.s32.totalorder %s28, 0
      %p228 = por %p226, %p227
      %s230 = sadd.s32 %s229, 1
      %p233 = scmp.eq.s32.totalorder %s22, 3
      %p234 = scmp.ne.s32.totalorder %s229, %s231
      %p235 = scmp.eq.s32.totalorder %s22, 0
      %p236 = por %p234, %p235
      %p237 = scmp.ne.s32.totalorder %s229, %s231
      %p238 = scmp.eq.s32.totalorder %s27, 3
      %p239 = por %p237, %p238
      %p240 = scmp.ne.s32.totalorder %s231, %s232
      %p241 = scmp.eq.s32.totalorder %s27, 0
      %p242 = por %p240, %p241
      %p243 = scmp.ne.s32.totalorder %s231, %s232
      %p244 = scmp.eq.s32.totalorder %s28, 3
      %p245 = por %p243, %p244
      %p247 = scmp.ne.s32.totalorder %s232, %s246
      %p248 = scmp.eq.s32.totalorder %s28, 0
      %p249 = por %p247, %p248
      %s250 = ssub.s32 %s22, %s29
      %p251 = scmp.eq.s32.totalorder %s250, 0
      %s253 = sadd.s32 %s252, 1
      %s254 = scalar_select %p251, %s252, %s253
      %p257 = pneg %p251
      %p258 = scmp.eq.s32.totalorder %s22, 3
      %p259 = por %p257, %p258
      %p260 = scmp.ne.s32.totalorder %s252, %s255
      %p261 = scmp.eq.s32.totalorder %s22, 0
      %p262 = por %p260, %p261
      %p263 = scmp.ne.s32.totalorder %s252, %s255
      %p264 = scmp.eq.s32.totalorder %s27, 3
      %p265 = por %p263, %p264
      %p266 = scmp.ne.s32.totalorder %s255, %s256
      %p267 = scmp.eq.s32.totalorder %s27, 0
      %p268 = por %p266, %p267
      %p269 = scmp.ne.s32.totalorder %s255, %s256
      %p270 = scmp.eq.s32.totalorder %s28, 3
      %p271 = por %p269, %p270
      %p273 = scmp.ne.s32.totalorder %s256, %s272
      %p274 = scmp.eq.s32.totalorder %s28, 0
      %p275 = por %p273, %p274
      %p276 = scmp.le.s32.totalorder 1, %s22
      %p277 = scmp.lt.s32.totalorder %s22, 5
      %p278 = pnand %p276, %p277
      %p279 = pneg %p278
      // Predicated region
      $region9: #{tpu_custom_call.1} parent=5 // pred_check
        _
      $region10: #{tpu_custom_call.1} parent=5 // pred_check_branch
        %281 = sbr.rel (%p278) target = $region12
      $region11: #{tpu_custom_call.1} parent=5 // pred_region
        %s282 = ssub.s32 %s22, 1
        // Predicated region
        $region13: #{tpu_custom_call.1} parent=11 // pred_check
          %p283 = pneg %p95
        $region14: #{tpu_custom_call.1} parent=11 // pred_check_branch
          %285 = sbr.rel (%p283) target = $region16
        $region15: #{tpu_custom_call.1} parent=11 // pred_region
          _
        $region16: #{tpu_custom_call.1} parent=11 // pred_fallthru
          _
        // Predicated region
        $region17: #{tpu_custom_call.1} parent=11 // pred_check
          %p286 = pneg %p116
        $region18: #{tpu_custom_call.1} parent=11 // pred_check_branch
          %288 = sbr.rel (%p286) target = $region20
        $region19: #{tpu_custom_call.1} parent=11 // pred_region
          _
        $region20: #{tpu_custom_call.1} parent=11 // pred_fallthru
          _
        // Predicated region
        $region21: #{tpu_custom_call.1} parent=11 // pred_check
          %p289 = pneg %p137
        $region22: #{tpu_custom_call.1} parent=11 // pred_check_branch
          %291 = sbr.rel (%p289) target = $region24
        $region23: #{tpu_custom_call.1} parent=11 // pred_region
          _
        $region24: #{tpu_custom_call.1} parent=11 // pred_fallthru
          _
        // Predicated region
        $region25: #{tpu_custom_call.1} parent=11 // pred_check
          %p292 = pneg %p158
        $region26: #{tpu_custom_call.1} parent=11 // pred_check_branch
          %294 = sbr.rel (%p292) target = $region28
        $region27: #{tpu_custom_call.1} parent=11 // pred_region
          _
        $region28: #{tpu_custom_call.1} parent=11 // pred_fallthru
          _
        // Predicated region
        $region29: #{tpu_custom_call.1} parent=11 // pred_check
          %p295 = pneg %p179
        $region30: #{tpu_custom_call.1} parent=11 // pred_check_branch
          %297 = sbr.rel (%p295) target = $region32
        $region31: #{tpu_custom_call.1} parent=11 // pred_region
          _
        $region32: #{tpu_custom_call.1} parent=11 // pred_fallthru
          _
        // Predicated region
        $region33: #{tpu_custom_call.1} parent=11 // pred_check
          %p298 = pneg %p200
        $region34: #{tpu_custom_call.1} parent=11 // pred_check_branch
          %300 = sbr.rel (%p298) target = $region36
        $region35: #{tpu_custom_call.1} parent=11 // pred_region
          _
        $region36: #{tpu_custom_call.1} parent=11 // pred_fallthru
          _
        // Predicated region
        $region37: #{tpu_custom_call.1} parent=11 // pred_check
          %p301 = pneg %p221
        $region38: #{tpu_custom_call.1} parent=11 // pred_check_branch
          %303 = sbr.rel (%p301) target = $region40
        $region39: #{tpu_custom_call.1} parent=11 // pred_region
          _
        $region40: #{tpu_custom_call.1} parent=11 // pred_fallthru
          _
        // Predicated region
        $region41: #{tpu_custom_call.1} parent=11 // pred_check
          %p304 = pneg %p242
        $region42: #{tpu_custom_call.1} parent=11 // pred_check_branch
          %306 = sbr.rel (%p304) target = $region44
        $region43: #{tpu_custom_call.1} parent=11 // pred_region
          _
        $region44: #{tpu_custom_call.1} parent=11 // pred_fallthru
          _
      $region12: #{tpu_custom_call.1} parent=5 // pred_fallthru
        _
      %p307 = scmp.lt.s32.totalorder %s22, 4
      // Predicated region
      $region45: #{tpu_custom_call.1} parent=5 // pred_check
        %p308 = pneg %p307
      $region46: #{tpu_custom_call.1} parent=5 // pred_check_branch
        %310 = sbr.rel (%p308) target = $region48
      $region47: #{tpu_custom_call.1} parent=5 // pred_region
        // Predicated region
        $region49: #{tpu_custom_call.1} parent=47 // pred_check
          %p311 = pneg %p42
        $region50: #{tpu_custom_call.1} parent=47 // pred_check_branch
          %313 = sbr.rel (%p311) target = $region52
        $region51: #{tpu_custom_call.1} parent=47 // pred_region
          %s314 = sand.u32 %s32, 1
          %s315 = scalar_lea.sflag [#allocation3], %s314
          %s316 = sand.u32 %s32, 1
          %s317 = smul.addr %s316, 64
          %s318 = scalar_lea.vmem [#allocation2], %s317
          %s319 = smul.u32 4, %s22
          %s321 = ssub.s32 1024, 1024
          %322 = vsyncadd %s315, %s321
          %s323 = smul.addr %s319, 128
          %s324 = scalar_lea.hbm %s0, %s323
          %s325 = sshll.u32 %s318, 4
          %s326 = int_to_ptr.vmem [resolvable:$true] %s325
          %331 = dma.hbm_to_vmem [thread:$0]  %s324, 1024, %s326, %s315, 2048, 512, 32
        $region52: #{tpu_custom_call.1} parent=47 // pred_fallthru
          _
        // Predicated region
        $region53: #{tpu_custom_call.1} parent=47 // pred_check
          %p332 = pneg %p68
        $region54: #{tpu_custom_call.1} parent=47 // pred_check_branch
          %334 = sbr.rel (%p332) target = $region56
        $region55: #{tpu_custom_call.1} parent=47 // pred_region
          %s335 = smul.u32 4, %s22
          %p336 = scmp.lt.s32.totalorder %s335, 15
          %s337 = scalar_select %p336, %s335, 15
          %s338 = smul.addr %s337, 4
          %s339 = scalar_lea.vmem %s1, %s338
          %s340 = smul.u32 4, %s22
        $region56: #{tpu_custom_call.1} parent=47 // pred_fallthru
          _
      $region48: #{tpu_custom_call.1} parent=5 // pred_fallthru
        _
      %p341 = scmp.le.s32.totalorder 1, %s22
      %p342 = scmp.lt.s32.totalorder %s22, 5
      %p343 = pnand %p341, %p342
      %p344 = pneg %p343
      // Predicated region
      $region57: #{tpu_custom_call.1} parent=5 // pred_check
        _
      $region58: #{tpu_custom_call.1} parent=5 // pred_check_branch
        %346 = sbr.rel (%p343) target = $region60
      $region59: #{tpu_custom_call.1} parent=5 // pred_region
        %s347 = ssub.s32 %s22, 1
        %s348 = sand.u32 %s35, 1
        %s349 = scalar_lea.sflag [#allocation3], %s348
        %s350 = sand.u32 %s35, 1
        %s351 = smul.addr %s350, 64
        %s352 = scalar_lea.vmem [#allocation2], %s351
        // Predicated region
        $region61: #{tpu_custom_call.1} parent=59 // pred_check
          %p353 = pneg %p48
        $region62: #{tpu_custom_call.1} parent=59 // pred_check_branch
          %355 = sbr.rel (%p353) target = $region64
        $region63: #{tpu_custom_call.1} parent=59 // pred_region
          %356 = dma.done %s349, 1024
        $region64: #{tpu_custom_call.1} parent=59 // pred_fallthru
          _
        %s357 = sand.u32 %s35, 1
        %s358 = scalar_lea.sflag [#allocation3], %s357
        %s359 = sand.u32 %s35, 1
        %s360 = smul.addr %s359, 64
        %s361 = scalar_lea.vmem [#allocation2], %s360
        %p362 = pneg %p48
        %p363 = pneg %p45
        %s364 = smul.u32 4, %s27
        %p365 = scmp.lt.s32.totalorder %s364, 15
        %s366 = scalar_select %p365, %s364, 15
        %s367 = smul.addr %s366, 4
        %s368 = scalar_lea.vmem %s1, %s367
        %p369 = pneg %p74
        %p370 = pneg %p71
        %p371 = pneg %p95
        %p372 = pneg %p92
        %p373 = pneg %p116
        %p374 = pneg %p113
        %p375 = pneg %p137
        %p376 = pneg %p134
        %p377 = pneg %p158
        %p378 = pneg %p155
        %p379 = pneg %p179
        %p380 = pneg %p176
        %p381 = pneg %p200
        %p382 = pneg %p197
        %p383 = pneg %p221
        %p384 = pneg %p218
        %p385 = pneg %p242
        %p386 = pneg %p239
        %p387 = pneg %p268
        %p388 = pneg %p265
        %s389 = sand.u32 %s255, 1
        %s390 = scalar_lea.sflag [#allocation4], %s389
        %s391 = sand.u32 %s255, 1
        %s392 = smul.addr %s391, 64
        %s393 = scalar_lea.vmem [#allocation5], %s392
        %s394 = smul.u32 4, %s27
        %s395 = smul.u32 4, %s27
        %p396 = scmp.lt.s32.totalorder %s395, 15
        %s397 = scalar_select %p396, %s395, 15
        %s398 = smul.addr %s397, 4
        %s399 = scalar_lea.vmem %s1, %s398
        %s400 = smul.u32 4, %s27
        %s401 = smul.u32 4, %s27
        %v403 = vld [vmem:[%s352] sm:$0xff]
        %v404 = vld [vmem:[%s352 + $0x8] sm:$0xff]
        %v405 = vld [vmem:[%s352 + $0x10] sm:$0xff]
        %v406 = vld [vmem:[%s352 + $0x18] sm:$0xff]
        %v407 = vld [vmem:[%s352 + $0x20] sm:$0xff]
        %v408 = vld [vmem:[%s352 + $0x28] sm:$0xff]
        %v409 = vld [vmem:[%s352 + $0x30] sm:$0xff]
        %v410 = vld [vmem:[%s352 + $0x38] sm:$0xff]
        %vm419 = vcmask 1044480
        %v420 = vrot.slane %v403, 3
        %v421 = vrot.slane %v407, 3
        %v422 = vsel %vm419, %v420, %v421
        %v423 = vrot.slane %v404, 3
        %v424 = vrot.slane %v408, 3
        %v425 = vsel %vm419, %v423, %v424
        %v426 = vrot.slane %v405, 3
        %v427 = vrot.slane %v409, 3
        %v428 = vsel %vm419, %v426, %v427
        %v429 = vrot.slane %v406, 3
        %v430 = vrot.slane %v410, 3
        %v431 = vsel %vm419, %v429, %v430
        %v436 = vsub.f32 %v403, %v422
        %v437 = vsub.f32 %v404, %v425
        %v438 = vsub.f32 %v405, %v428
        %v439 = vsub.f32 %v406, %v431
        %v440 = vmul.f32 %v436, %v436
        %v441 = vmul.f32 %v437, %v437
        %v442 = vmul.f32 %v438, %v438
        %v443 = vmul.f32 %v439, %v439
        %v448 = vrot.slane %v440, 3
        %v449 = vrot.slane %v441, 3
        %v450 = vrot.slane %v442, 3
        %v451 = vrot.slane %v443, 3
        %vm456 = vcmask 1042432
        %v457 = vsel %vm456, %v448, 0.0
        %v458 = vrot.slane %v457, 4
        %v459 = vadd.f32 %v457, %v458
        %v460 = vrot.slane %v459, 2
        %v461 = vadd.f32 %v459, %v460
        %v462 = vrot.slane %v461, 1
        %v463 = vadd.f32 %v461, %v462
        %v464 = vsel %vm456, %v449, 0.0
        %v465 = vrot.slane %v464, 4
        %v466 = vadd.f32 %v464, %v465
        %v467 = vrot.slane %v466, 2
        %v468 = vadd.f32 %v466, %v467
        %v469 = vrot.slane %v468, 1
        %v470 = vadd.f32 %v468, %v469
        %v471 = vsel %vm456, %v450, 0.0
        %v472 = vrot.slane %v471, 4
        %v473 = vadd.f32 %v471, %v472
        %v474 = vrot.slane %v473, 2
        %v475 = vadd.f32 %v473, %v474
        %v476 = vrot.slane %v475, 1
        %v477 = vadd.f32 %v475, %v476
        %v478 = vsel %vm456, %v451, 0.0
        %v479 = vrot.slane %v478, 4
        %v480 = vadd.f32 %v478, %v479
        %v481 = vrot.slane %v480, 2
        %v482 = vadd.f32 %v480, %v481
        %v483 = vrot.slane %v482, 1
        %v484 = vadd.f32 %v482, %v483
        %v485 = vrsqrt.pop %v463
        %v486 = vmul.f32 %v463, %v485
        %vm487 = vcmp.eq.f32.partialorder %v463, inf
        %v488 = vsel %vm487, %v463, %v486
        %vm489 = vcmp.eq.f32.partialorder %v463, 0.0
        %v490 = vand.u32 %v463, 2147483648
        %v491 = vsel %vm489, %v490, %v488
        %v492 = vrsqrt.pop %v470
        %v493 = vmul.f32 %v470, %v492
        %vm494 = vcmp.eq.f32.partialorder %v470, inf
        %v495 = vsel %vm494, %v470, %v493
        %vm496 = vcmp.eq.f32.partialorder %v470, 0.0
        %v497 = vand.u32 %v470, 2147483648
        %v498 = vsel %vm496, %v497, %v495
        %v499 = vrsqrt.pop %v477
        %v500 = vmul.f32 %v477, %v499
        %vm501 = vcmp.eq.f32.partialorder %v477, inf
        %v502 = vsel %vm501, %v477, %v500
        %vm503 = vcmp.eq.f32.partialorder %v477, 0.0
        %v504 = vand.u32 %v477, 2147483648
        %v505 = vsel %vm503, %v504, %v502
        %v506 = vrsqrt.pop %v484
        %v507 = vmul.f32 %v484, %v506
        %vm508 = vcmp.eq.f32.partialorder %v484, inf
        %v509 = vsel %vm508, %v484, %v507
        %vm510 = vcmp.eq.f32.partialorder %v484, 0.0
        %v511 = vand.u32 %v484, 2147483648
        %v512 = vsel %vm510, %v511, %v509
        %v513 = vmul.f32 %v403, %v403
        %v514 = vmul.f32 %v404, %v404
        %v515 = vmul.f32 %v405, %v405
        %v516 = vmul.f32 %v406, %v406
        %v517 = vsel %vm456, %v513, 0.0
        %v518 = vrot.slane %v517, 4
        %v519 = vadd.f32 %v517, %v518
        %v520 = vrot.slane %v519, 2
        %v521 = vadd.f32 %v519, %v520
        %v522 = vrot.slane %v521, 1
        %v523 = vadd.f32 %v521, %v522
        %v524 = vsel %vm456, %v514, 0.0
        %v525 = vrot.slane %v524, 4
        %v526 = vadd.f32 %v524, %v525
        %v527 = vrot.slane %v526, 2
        %v528 = vadd.f32 %v526, %v527
        %v529 = vrot.slane %v528, 1
        %v530 = vadd.f32 %v528, %v529
        %v531 = vsel %vm456, %v515, 0.0
        %v532 = vrot.slane %v531, 4
        %v533 = vadd.f32 %v531, %v532
        %v534 = vrot.slane %v533, 2
        %v535 = vadd.f32 %v533, %v534
        %v536 = vrot.slane %v535, 1
        %v537 = vadd.f32 %v535, %v536
        %v538 = vsel %vm456, %v516, 0.0
        %v539 = vrot.slane %v538, 4
        %v540 = vadd.f32 %v538, %v539
        %v541 = vrot.slane %v540, 2
        %v542 = vadd.f32 %v540, %v541
        %v543 = vrot.slane %v542, 1
        %v544 = vadd.f32 %v542, %v543
        %v545 = vrsqrt.pop %v523
        %v546 = vmul.f32 %v523, %v545
        %vm547 = vcmp.eq.f32.partialorder %v523, inf
        %v548 = vsel %vm547, %v523, %v546
        %vm549 = vcmp.eq.f32.partialorder %v523, 0.0
        %v550 = vand.u32 %v523, 2147483648
        %v551 = vsel %vm549, %v550, %v548
        %v552 = vrsqrt.pop %v530
        %v553 = vmul.f32 %v530, %v552
        %vm554 = vcmp.eq.f32.partialorder %v530, inf
        %v555 = vsel %vm554, %v530, %v553
        %vm556 = vcmp.eq.f32.partialorder %v530, 0.0
        %v557 = vand.u32 %v530, 2147483648
        %v558 = vsel %vm556, %v557, %v555
        %v559 = vrsqrt.pop %v537
        %v560 = vmul.f32 %v537, %v559
        %vm561 = vcmp.eq.f32.partialorder %v537, inf
        %v562 = vsel %vm561, %v537, %v560
        %vm563 = vcmp.eq.f32.partialorder %v537, 0.0
        %v564 = vand.u32 %v537, 2147483648
        %v565 = vsel %vm563, %v564, %v562
        %v566 = vrsqrt.pop %v544
        %v567 = vmul.f32 %v544, %v566
        %vm568 = vcmp.eq.f32.partialorder %v544, inf
        %v569 = vsel %vm568, %v544, %v567
        %vm570 = vcmp.eq.f32.partialorder %v544, 0.0
        %v571 = vand.u32 %v544, 2147483648
        %v572 = vsel %vm570, %v571, %v569
        %v573 = vrot.slane %v403, 7
        %v574 = vrot.slane %v404, 7
        %v575 = vrot.slane %v405, 7
        %v576 = vrot.slane %v406, 7
        %v585 = vrot.slane %v436, 4
        %v586 = vrot.slane %v437, 4
        %v587 = vrot.slane %v438, 4
        %v588 = vrot.slane %v439, 4
        %v593 = vrot.slane %v407, 6
        %v594 = vrot.slane %v408, 6
        %v595 = vrot.slane %v409, 6
        %v596 = vrot.slane %v410, 6
        %v601 = vsel %vm456, %v403, %v551
        %v602 = vsel %vm456, %v404, %v558
        %v603 = vsel %vm456, %v405, %v565
        %v604 = vsel %vm456, %v406, %v572
        %vm605 = vcmask 1043456
        %v606 = vsel %vm605, %v601, %v573
        %v607 = vsel %vm605, %v602, %v574
        %v608 = vsel %vm605, %v603, %v575
        %v609 = vsel %vm605, %v604, %v576
        %vm610 = vcmask 1046528
        %v611 = vsel %vm610, %v606, %v585
        %v612 = vsel %vm610, %v607, %v586
        %v613 = vsel %vm610, %v608, %v587
        %v614 = vsel %vm610, %v609, %v588
        %vm615 = vcmask 1041408
        %v616 = vsel %vm615, %v585, %v491
        %v617 = vsel %vm615, %v586, %v498
        %v618 = vsel %vm615, %v587, %v505
        %v619 = vsel %vm615, %v588, %v512
        %v620 = vsel %vm456, %v616, %v593
        %v621 = vsel %vm456, %v617, %v594
        %v622 = vsel %vm456, %v618, %v595
        %v623 = vsel %vm456, %v619, %v596
        %vm624 = vcmask 1045504
        %v625 = vsel %vm624, %v620, 0.0
        %v626 = vsel %vm624, %v621, 0.0
        %v627 = vsel %vm624, %v622, 0.0
        %v628 = vsel %vm624, %v623, 0.0
        %v629 = vadd.f32 %v407, 1.0
        %v630 = vadd.f32 %v408, 1.0
        %v631 = vadd.f32 %v409, 1.0
        %v632 = vadd.f32 %v410, 1.0
        %v633 = vrcp.pop %v629
        %v634 = vrcp.pop %v630
        %v635 = vrcp.pop %v631
        %v636 = vrcp.pop %v632
        %v637 = vlaneseq
        %v638 = vshrl.u32 %v637, 7
        %v639 = vsub.s32 4, %v638
        %v640 = vrot.slane %v633, %v639
        %v641 = vlaneseq
        %v642 = vshrl.u32 %v641, 7
        %v643 = vsub.s32 4, %v642
        %v644 = vrot.slane %v634, %v643
        %v645 = vlaneseq
        %v646 = vshrl.u32 %v645, 7
        %v647 = vsub.s32 4, %v646
        %v648 = vrot.slane %v635, %v647
        %v649 = vlaneseq
        %v650 = vshrl.u32 %v649, 7
        %v651 = vsub.s32 4, %v650
        %v652 = vrot.slane %v636, %v651
        %v653 = vmul.f32 %v611, %v640
        %v654 = vmul.f32 %v612, %v644
        %v655 = vmul.f32 %v613, %v648
        %v656 = vmul.f32 %v614, %v652
        %v657 = vmul.f32 %v625, %v640
        %v658 = vmul.f32 %v626, %v644
        %v659 = vmul.f32 %v627, %v648
        %v660 = vmul.f32 %v628, %v652
        %v661 = vld [vmem:[%s2] sm:$0xff]
        %v662 = vld [vmem:[%s2 + $0x8] sm:$0xff]
        %vm663 = vcmask 130048
        %v665 = vsel %vm663, %v661, 0
        %v668 = vsel %vm663, %v662, 0
        %670 = vmatprep.subr.mxu0 %v654
        %671 = vmatpush1.msra.mxu0 %v653
        %672 = vmatprep.subr.mxu0 %v658
        %673 = vmatpush1.msra.mxu0 %v657
        %674 = vmatprep.subr.mxu0 0.0
        %675 = vmatpush1.msra.mxu0 0.0
        %676 = vmatprep.subr.mxu0 0.0
        %677 = vmatpush1.msra.mxu0 0.0
        %678 = vmatprep.subr.mxu0 0.0
        %679 = vmatpush1.msra.mxu0 0.0
        %680 = vmatprep.subr.mxu0 0.0
        %681 = vmatpush1.msra.mxu0 0.0
        %682 = vmatprep.subr.mxu0 0.0
        %683 = vmatpush1.msra.mxu0 0.0
        %684 = vmatprep.subr.mxu0 0.0
        %685 = vmatpush1.msra.mxu0 0.0
        %686 = vmatprep.subr.mxu0 0.0
        %687 = vmatpush1.msra.mxu0 0.0
        %688 = vmatprep.subr.mxu0 0.0
        %689 = vmatpush1.msra.mxu0 0.0
        %690 = vmatprep.subr.mxu0 0.0
        %691 = vmatpush1.msra.mxu0 0.0
        %692 = vmatprep.subr.mxu0 0.0
        %693 = vmatpush1.msra.mxu0 0.0
        %694 = vmatprep.subr.mxu0 0.0
        %695 = vmatpush1.msra.mxu0 0.0
        %696 = vmatprep.subr.mxu0 0.0
        %697 = vmatpush1.msra.mxu0 0.0
        %698 = vmatprep.subr.mxu0 0.0
        %699 = vmatpush1.msra.mxu0 0.0
        %700 = vmatprep.subr.mxu0 0.0
        %701 = vmatpush1.msra.mxu0 0.0
        %702 = vmatprep.subr.mxu0 0.0
        %703 = vmatpush1.msra.mxu0 0.0
        %704 = vmatprep.subr.mxu0 0.0
        %705 = vmatpush1.msra.mxu0 0.0
        %706 = vmatprep.subr.mxu0 0.0
        %707 = vmatpush1.msra.mxu0 0.0
        %708 = vmatprep.subr.mxu0 0.0
        %709 = vmatpush1.msra.mxu0 0.0
        %710 = vmatprep.subr.mxu0 0.0
        %711 = vmatpush1.msra.mxu0 0.0
        %712 = vmatprep.subr.mxu0 0.0
        %713 = vmatpush1.msra.mxu0 0.0
        %714 = vmatprep.subr.mxu0 0.0
        %715 = vmatpush1.msra.mxu0 0.0
        %716 = vmatprep.subr.mxu0 0.0
        %717 = vmatpush1.msra.mxu0 0.0
        %718 = vmatprep.subr.mxu0 0.0
        %719 = vmatpush1.msra.mxu0 0.0
        %720 = vmatprep.subr.mxu0 0.0
        %721 = vmatpush1.msra.mxu0 0.0
        %722 = vmatprep.subr.mxu0 0.0
        %723 = vmatpush1.msra.mxu0 0.0
        %724 = vmatprep.subr.mxu0 0.0
        %725 = vmatpush1.msra.mxu0 0.0
        %726 = vmatprep.subr.mxu0 0.0
        %727 = vmatpush1.msra.mxu0 0.0
        %728 = vmatprep.subr.mxu0 0.0
        %729 = vmatpush1.msra.mxu0 0.0
        %730 = vmatprep.subr.mxu0 0.0
        %731 = vmatpush1.msra.mxu0 0.0
        %732 = vmatprep.subr.mxu0 0.0
        %733 = vmatpush1.msra.mxu0 0.0
        %734 = vmatprep.mubr.f32.mxu0 0.0
        %735 = vmatmul.mubr.f32.gmra.mrb[0].mxu0 %v665
        %v736 = vpop.f32.mrb[0].mxu0
        %v737 = vadd.f32 0.0, %v736
        %v738 = vpop.f32.mrb[0].mxu0
        %v739 = vadd.f32 0.0, %v738
        %740 = vmatprep.mubr.f32.mxu0 0.0
        %741 = vmatmul.mubr.f32.gmra.mrb[0].mxu0 %v668
        %v742 = vpop.f32.mrb[0].mxu0
        %v743 = vadd.f32 0.0, %v742
        %v744 = vpop.f32.mrb[0].mxu0
        %v745 = vadd.f32 0.0, %v744
        %746 = vdwg.mxu0
        %747 = vmatprep.subr.mxu0 %v656
        %748 = vmatpush1.msra.mxu0 %v655
        %749 = vmatprep.subr.mxu0 %v660
        %750 = vmatpush1.msra.mxu0 %v659
        %751 = vmatprep.subr.mxu0 0.0
        %752 = vmatpush1.msra.mxu0 0.0
        %753 = vmatprep.subr.mxu0 0.0
        %754 = vmatpush1.msra.mxu0 0.0
        %755 = vmatprep.subr.mxu0 0.0
        %756 = vmatpush1.msra.mxu0 0.0
        %757 = vmatprep.subr.mxu0 0.0
        %758 = vmatpush1.msra.mxu0 0.0
        %759 = vmatprep.subr.mxu0 0.0
        %760 = vmatpush1.msra.mxu0 0.0
        %761 = vmatprep.subr.mxu0 0.0
        %762 = vmatpush1.msra.mxu0 0.0
        %763 = vmatprep.subr.mxu0 0.0
        %764 = vmatpush1.msra.mxu0 0.0
        %765 = vmatprep.subr.mxu0 0.0
        %766 = vmatpush1.msra.mxu0 0.0
        %767 = vmatprep.subr.mxu0 0.0
        %768 = vmatpush1.msra.mxu0 0.0
        %769 = vmatprep.subr.mxu0 0.0
        %770 = vmatpush1.msra.mxu0 0.0
        %771 = vmatprep.subr.mxu0 0.0
        %772 = vmatpush1.msra.mxu0 0.0
        %773 = vmatprep.subr.mxu0 0.0
        %774 = vmatpush1.msra.mxu0 0.0
        %775 = vmatprep.subr.mxu0 0.0
        %776 = vmatpush1.msra.mxu0 0.0
        %777 = vmatprep.subr.mxu0 0.0
        %778 = vmatpush1.msra.mxu0 0.0
        %779 = vmatprep.subr.mxu0 0.0
        %780 = vmatpush1.msra.mxu0 0.0
        %781 = vmatprep.subr.mxu0 0.0
        %782 = vmatpush1.msra.mxu0 0.0
        %783 = vmatprep.subr.mxu0 0.0
        %784 = vmatpush1.msra.mxu0 0.0
        %785 = vmatprep.subr.mxu0 0.0
        %786 = vmatpush1.msra.mxu0 0.0
        %787 = vmatprep.subr.mxu0 0.0
        %788 = vmatpush1.msra.mxu0 0.0
        %789 = vmatprep.subr.mxu0 0.0
        %790 = vmatpush1.msra.mxu0 0.0
        %791 = vmatprep.subr.mxu0 0.0
        %792 = vmatpush1.msra.mxu0 0.0
        %793 = vmatprep.subr.mxu0 0.0
        %794 = vmatpush1.msra.mxu0 0.0
        %795 = vmatprep.subr.mxu0 0.0
        %796 = vmatpush1.msra.mxu0 0.0
        %797 = vmatprep.subr.mxu0 0.0
        %798 = vmatpush1.msra.mxu0 0.0
        %799 = vmatprep.subr.mxu0 0.0
        %800 = vmatpush1.msra.mxu0 0.0
        %801 = vmatprep.subr.mxu0 0.0
        %802 = vmatpush1.msra.mxu0 0.0
        %803 = vmatprep.subr.mxu0 0.0
        %804 = vmatpush1.msra.mxu0 0.0
        %805 = vmatprep.subr.mxu0 0.0
        %806 = vmatpush1.msra.mxu0 0.0
        %807 = vmatprep.subr.mxu0 0.0
        %808 = vmatpush1.msra.mxu0 0.0
        %809 = vmatprep.subr.mxu0 0.0
        %810 = vmatpush1.msra.mxu0 0.0
        %811 = vmatprep.mubr.f32.mxu0 0.0
        %812 = vmatmul.mubr.f32.gmra.mrb[0].mxu0 %v665
        %v813 = vpop.f32.mrb[0].mxu0
        %v814 = vadd.f32 0.0, %v813
        %v815 = vpop.f32.mrb[0].mxu0
        %v816 = vadd.f32 0.0, %v815
        %817 = vmatprep.mubr.f32.mxu0 0.0
        %818 = vmatmul.mubr.f32.gmra.mrb[0].mxu0 %v668
        %v819 = vpop.f32.mrb[0].mxu0
        %v820 = vadd.f32 0.0, %v819
        %v821 = vpop.f32.mrb[0].mxu0
        %v822 = vadd.f32 0.0, %v821
        %823 = vdwg.mxu0
        %v824 = vld [vmem:[%s3] sm:$0xff]
        %v825 = vld [vmem:[%s3 + $0x8] sm:$0xff]
        %827 = vset.pattern.permute.xlu0 0
        %828 = vperm.xlu0 %827, %v824
        %v829 = vpop.permute.xlu0 %828
        %832 = vset.pattern.permute.xlu0 0
        %833 = vperm.xlu0 %832, %v825
        %v834 = vpop.permute.xlu0 %833
        %v836 = vmul.f32 %v737, %v829
        %v837 = vmul.f32 %v739, %v829
        %v838 = vmul.f32 %v814, %v829
        %v839 = vmul.f32 %v816, %v829
        %v840 = vmul.f32 %v743, %v834
        %v841 = vmul.f32 %v745, %v834
        %v842 = vmul.f32 %v820, %v834
        %v843 = vmul.f32 %v822, %v834
        %v844 = vld [vmem:[%s4] sm:$0xff]
        %v845 = vld [vmem:[%s4 + $0x8] sm:$0xff]
        %847 = vset.pattern.permute.xlu0 0
        %848 = vperm.xlu0 %847, %v844
        %v849 = vpop.permute.xlu0 %848
        %852 = vset.pattern.permute.xlu0 0
        %853 = vperm.xlu0 %852, %v845
        %v854 = vpop.permute.xlu0 %853
        %v856 = vadd.f32 %v836, %v849
        %v857 = vadd.f32 %v837, %v849
        %v858 = vadd.f32 %v838, %v849
        %v859 = vadd.f32 %v839, %v849
        %v860 = vadd.f32 %v840, %v854
        %v861 = vadd.f32 %v841, %v854
        %v862 = vadd.f32 %v842, %v854
        %v863 = vadd.f32 %v843, %v854
        %v864 = vmax.f32 %v856, 0.0
        %v865 = vmax.f32 %v857, 0.0
        %v866 = vmax.f32 %v858, 0.0
        %v867 = vmax.f32 %v859, 0.0
        %v868 = vmax.f32 %v860, 0.0
        %v869 = vmax.f32 %v861, 0.0
        %v870 = vmax.f32 %v862, 0.0
        %v871 = vmax.f32 %v863, 0.0
        %v872 = vld [vmem:[%s5] sm:$0xff]
        %v873 = vld [vmem:[%s6] sm:$0xff]
        %875 = vset.pattern.permute.xlu0 0
        %876 = vperm.xlu0 %875, %v873
        %v877 = vpop.permute.xlu0 %876
        %v880 = vsel %vm663, %v872, 0
        %882 = vmatprep.subr.mxu0 %v865
        %883 = vmatpush1.msra.mxu0 %v864
        %884 = vmatprep.subr.mxu0 %v869
        %885 = vmatpush1.msra.mxu0 %v868
        %886 = vmatprep.subr.mxu0 0.0
        %887 = vmatpush1.msra.mxu0 0.0
        %888 = vmatprep.subr.mxu0 0.0
        %889 = vmatpush1.msra.mxu0 0.0
        %890 = vmatprep.subr.mxu0 0.0
        %891 = vmatpush1.msra.mxu0 0.0
        %892 = vmatprep.subr.mxu0 0.0
        %893 = vmatpush1.msra.mxu0 0.0
        %894 = vmatprep.subr.mxu0 0.0
        %895 = vmatpush1.msra.mxu0 0.0
        %896 = vmatprep.subr.mxu0 0.0
        %897 = vmatpush1.msra.mxu0 0.0
        %898 = vmatprep.subr.mxu0 0.0
        %899 = vmatpush1.msra.mxu0 0.0
        %900 = vmatprep.subr.mxu0 0.0
        %901 = vmatpush1.msra.mxu0 0.0
        %902 = vmatprep.subr.mxu0 0.0
        %903 = vmatpush1.msra.mxu0 0.0
        %904 = vmatprep.subr.mxu0 0.0
        %905 = vmatpush1.msra.mxu0 0.0
        %906 = vmatprep.subr.mxu0 0.0
        %907 = vmatpush1.msra.mxu0 0.0
        %908 = vmatprep.subr.mxu0 0.0
        %909 = vmatpush1.msra.mxu0 0.0
        %910 = vmatprep.subr.mxu0 0.0
        %911 = vmatpush1.msra.mxu0 0.0
        %912 = vmatprep.subr.mxu0 0.0
        %913 = vmatpush1.msra.mxu0 0.0
        %914 = vmatprep.subr.mxu0 0.0
        %915 = vmatpush1.msra.mxu0 0.0
        %916 = vmatprep.subr.mxu0 0.0
        %917 = vmatpush1.msra.mxu0 0.0
        %918 = vmatprep.subr.mxu0 0.0
        %919 = vmatpush1.msra.mxu0 0.0
        %920 = vmatprep.subr.mxu0 0.0
        %921 = vmatpush1.msra.mxu0 0.0
        %922 = vmatprep.subr.mxu0 0.0
        %923 = vmatpush1.msra.mxu0 0.0
        %924 = vmatprep.subr.mxu0 0.0
        %925 = vmatpush1.msra.mxu0 0.0
        %926 = vmatprep.subr.mxu0 0.0
        %927 = vmatpush1.msra.mxu0 0.0
        %928 = vmatprep.subr.mxu0 0.0
        %929 = vmatpush1.msra.mxu0 0.0
        %930 = vmatprep.subr.mxu0 0.0
        %931 = vmatpush1.msra.mxu0 0.0
        %932 = vmatprep.subr.mxu0 0.0
        %933 = vmatpush1.msra.mxu0 0.0
        %934 = vmatprep.subr.mxu0 0.0
        %935 = vmatpush1.msra.mxu0 0.0
        %936 = vmatprep.subr.mxu0 0.0
        %937 = vmatpush1.msra.mxu0 0.0
        %938 = vmatprep.subr.mxu0 0.0
        %939 = vmatpush1.msra.mxu0 0.0
        %940 = vmatprep.subr.mxu0 0.0
        %941 = vmatpush1.msra.mxu0 0.0
        %942 = vmatprep.subr.mxu0 0.0
        %943 = vmatpush1.msra.mxu0 0.0
        %944 = vmatprep.subr.mxu0 0.0
        %945 = vmatpush1.msra.mxu0 0.0
        %946 = vmatprep.mubr.f32.mxu0 0.0
        %947 = vmatmul.mubr.f32.gmra.mrb[0].mxu0 %v880
        %v948 = vpop.f32.mrb[0].mxu0
        %v949 = vadd.f32 %v877, %v948
        %v950 = vpop.f32.mrb[0].mxu0
        %v951 = vadd.f32 %v877, %v950
        %952 = vdwg.mxu0
        %953 = vmatprep.subr.mxu0 %v867
        %954 = vmatpush1.msra.mxu0 %v866
        %955 = vmatprep.subr.mxu0 %v871
        %956 = vmatpush1.msra.mxu0 %v870
        %957 = vmatprep.subr.mxu0 0.0
        %958 = vmatpush1.msra.mxu0 0.0
        %959 = vmatprep.subr.mxu0 0.0
        %960 = vmatpush1.msra.mxu0 0.0
        %961 = vmatprep.subr.mxu0 0.0
        %962 = vmatpush1.msra.mxu0 0.0
        %963 = vmatprep.subr.mxu0 0.0
        %964 = vmatpush1.msra.mxu0 0.0
        %965 = vmatprep.subr.mxu0 0.0
        %966 = vmatpush1.msra.mxu0 0.0
        %967 = vmatprep.subr.mxu0 0.0
        %968 = vmatpush1.msra.mxu0 0.0
        %969 = vmatprep.subr.mxu0 0.0
        %970 = vmatpush1.msra.mxu0 0.0
        %971 = vmatprep.subr.mxu0 0.0
        %972 = vmatpush1.msra.mxu0 0.0
        %973 = vmatprep.subr.mxu0 0.0
        %974 = vmatpush1.msra.mxu0 0.0
        %975 = vmatprep.subr.mxu0 0.0
        %976 = vmatpush1.msra.mxu0 0.0
        %977 = vmatprep.subr.mxu0 0.0
        %978 = vmatpush1.msra.mxu0 0.0
        %979 = vmatprep.subr.mxu0 0.0
        %980 = vmatpush1.msra.mxu0 0.0
        %981 = vmatprep.subr.mxu0 0.0
        %982 = vmatpush1.msra.mxu0 0.0
        %983 = vmatprep.subr.mxu0 0.0
        %984 = vmatpush1.msra.mxu0 0.0
        %985 = vmatprep.subr.mxu0 0.0
        %986 = vmatpush1.msra.mxu0 0.0
        %987 = vmatprep.subr.mxu0 0.0
        %988 = vmatpush1.msra.mxu0 0.0
        %989 = vmatprep.subr.mxu0 0.0
        %990 = vmatpush1.msra.mxu0 0.0
        %991 = vmatprep.subr.mxu0 0.0
        %992 = vmatpush1.msra.mxu0 0.0
        %993 = vmatprep.subr.mxu0 0.0
        %994 = vmatpush1.msra.mxu0 0.0
        %995 = vmatprep.subr.mxu0 0.0
        %996 = vmatpush1.msra.mxu0 0.0
        %997 = vmatprep.subr.mxu0 0.0
        %998 = vmatpush1.msra.mxu0 0.0
        %999 = vmatprep.subr.mxu0 0.0
        %1000 = vmatpush1.msra.mxu0 0.0
        %1001 = vmatprep.subr.mxu0 0.0
        %1002 = vmatpush1.msra.mxu0 0.0
        %1003 = vmatprep.subr.mxu0 0.0
        %1004 = vmatpush1.msra.mxu0 0.0
        %1005 = vmatprep.subr.mxu0 0.0
        %1006 = vmatpush1.msra.mxu0 0.0
        %1007 = vmatprep.subr.mxu0 0.0
        %1008 = vmatpush1.msra.mxu0 0.0
        %1009 = vmatprep.subr.mxu0 0.0
        %1010 = vmatpush1.msra.mxu0 0.0
        %1011 = vmatprep.subr.mxu0 0.0
        %1012 = vmatpush1.msra.mxu0 0.0
        %1013 = vmatprep.subr.mxu0 0.0
        %1014 = vmatpush1.msra.mxu0 0.0
        %1015 = vmatprep.subr.mxu0 0.0
        %1016 = vmatpush1.msra.mxu0 0.0
        %1017 = vmatprep.mubr.f32.mxu0 0.0
        %1018 = vmatmul.mubr.f32.gmra.mrb[0].mxu0 %v880
        %v1019 = vpop.f32.mrb[0].mxu0
        %v1020 = vadd.f32 %v877, %v1019
        %v1021 = vpop.f32.mrb[0].mxu0
        %v1022 = vadd.f32 %v877, %v1021
        %1023 = vdwg.mxu0
        %v1024 = vrot.slane %v949, 4
        %v1025 = vmax.f32 %v949, %v1024
        %v1026 = vrot.slane %v1025, 2
        %v1027 = vmax.f32 %v1025, %v1026
        %v1028 = vrot.slane %v1027, 1
        %v1029 = vmax.f32 %v1027, %v1028
        %v1030 = vrot.slane %v951, 4
        %v1031 = vmax.f32 %v951, %v1030
        %v1032 = vrot.slane %v1031, 2
        %v1033 = vmax.f32 %v1031, %v1032
        %v1034 = vrot.slane %v1033, 1
        %v1035 = vmax.f32 %v1033, %v1034
        %v1036 = vrot.slane %v1020, 4
        %v1037 = vmax.f32 %v1020, %v1036
        %v1038 = vrot.slane %v1037, 2
        %v1039 = vmax.f32 %v1037, %v1038
        %v1040 = vrot.slane %v1039, 1
        %v1041 = vmax.f32 %v1039, %v1040
        %v1042 = vrot.slane %v1022, 4
        %v1043 = vmax.f32 %v1022, %v1042
        %v1044 = vrot.slane %v1043, 2
        %v1045 = vmax.f32 %v1043, %v1044
        %v1046 = vrot.slane %v1045, 1
        %v1047 = vmax.f32 %v1045, %v1046
        %v1048 = vmax.f32 %v1029, 0.0
        %v1049 = vmax.f32 %v1035, 0.0
        %v1050 = vmax.f32 %v1041, 0.0
        %v1051 = vmax.f32 %v1047, 0.0
        %v1052 = vsub.f32 %v949, %v1048
        %v1053 = vsub.f32 %v951, %v1049
        %v1054 = vsub.f32 %v1020, %v1050
        %v1055 = vsub.f32 %v1022, %v1051
        %v1056 = vmul.f32 %v1052, 1.442695
        %v1057 = vpow.pop %v1056
        %v1058 = vmul.f32 %v1053, 1.442695
        %v1059 = vpow.pop %v1058
        %v1060 = vmul.f32 %v1054, 1.442695
        %v1061 = vpow.pop %v1060
        %v1062 = vmul.f32 %v1055, 1.442695
        %v1063 = vpow.pop %v1062
        %v1064 = vsub.f32 0.0, %v1048
        %v1065 = vsub.f32 0.0, %v1049
        %v1066 = vsub.f32 0.0, %v1050
        %v1067 = vsub.f32 0.0, %v1051
        %v1068 = vmul.f32 %v1064, 1.442695
        %v1069 = vpow.pop %v1068
        %v1070 = vmul.f32 %v1065, 1.442695
        %v1071 = vpow.pop %v1070
        %v1072 = vmul.f32 %v1066, 1.442695
        %v1073 = vpow.pop %v1072
        %v1074 = vmul.f32 %v1067, 1.442695
        %v1075 = vpow.pop %v1074
        %v1076 = vrot.slane %v1057, 4
        %v1077 = vadd.f32 %v1057, %v1076
        %v1078 = vrot.slane %v1077, 2
        %v1079 = vadd.f32 %v1077, %v1078
        %v1080 = vrot.slane %v1079, 1
        %v1081 = vadd.f32 %v1079, %v1080
        %v1082 = vrot.slane %v1059, 4
        %v1083 = vadd.f32 %v1059, %v1082
        %v1084 = vrot.slane %v1083, 2
        %v1085 = vadd.f32 %v1083, %v1084
        %v1086 = vrot.slane %v1085, 1
        %v1087 = vadd.f32 %v1085, %v1086
        %v1088 = vrot.slane %v1061, 4
        %v1089 = vadd.f32 %v1061, %v1088
        %v1090 = vrot.slane %v1089, 2
        %v1091 = vadd.f32 %v1089, %v1090
        %v1092 = vrot.slane %v1091, 1
        %v1093 = vadd.f32 %v1091, %v1092
        %v1094 = vrot.slane %v1063, 4
        %v1095 = vadd.f32 %v1063, %v1094
        %v1096 = vrot.slane %v1095, 2
        %v1097 = vadd.f32 %v1095, %v1096
        %v1098 = vrot.slane %v1097, 1
        %v1099 = vadd.f32 %v1097, %v1098
        %v1100 = vadd.f32 %v1069, %v1081
        %v1101 = vadd.f32 %v1071, %v1087
        %v1102 = vadd.f32 %v1073, %v1093
        %v1103 = vadd.f32 %v1075, %v1099
        %v1104 = vrcp.pop %v1100
        %v1105 = vrcp.pop %v1101
        %v1106 = vrcp.pop %v1102
        %v1107 = vrcp.pop %v1103
        %v1108 = vmul.f32 %v1057, %v1104
        %v1109 = vmul.f32 %v1059, %v1105
        %v1110 = vmul.f32 %v1061, %v1106
        %v1111 = vmul.f32 %v1063, %v1107
        %v1112 = vld [vmem:[%s7] sm:$0xf]
        %v1113 = vld [vmem:[%s7 + $0x4] sm:$0xf]
        %v1114 = vld [vmem:[%s7 + $0x8] sm:$0xf]
        %v1115 = vld [vmem:[%s7 + $0xc] sm:$0xf]
        %v1116 = vld [vmem:[%s7 + $0x10] sm:$0xf]
        %v1117 = vld [vmem:[%s7 + $0x14] sm:$0xf]
        %v1118 = vld [vmem:[%s7 + $0x18] sm:$0xf]
        %v1119 = vld [vmem:[%s7 + $0x1c] sm:$0xf]
        %v1120 = vld [vmem:[%s7 + $0x20] sm:$0xf]
        %v1121 = vld [vmem:[%s7 + $0x24] sm:$0xf]
        %v1122 = vld [vmem:[%s7 + $0x28] sm:$0xf]
        %v1123 = vld [vmem:[%s7 + $0x2c] sm:$0xf]
        %v1124 = vld [vmem:[%s7 + $0x30] sm:$0xf]
        %v1125 = vld [vmem:[%s7 + $0x34] sm:$0xf]
        %v1126 = vld [vmem:[%s7 + $0x38] sm:$0xf]
        %v1127 = vld [vmem:[%s7 + $0x3c] sm:$0xf]
        %v1128 = vld [vmem:[%s399] sm:$0xff]
        %v1129 = vld [vmem:[%s399 + $0x8] sm:$0xff]
        %v1146 = vunpack.c.l.b16 %v1112
        %v1147 = vunpack.c.l.b16 %v1113
        %v1148 = vunpack.c.l.b16 %v1114
        %v1149 = vunpack.c.l.b16 %v1115
        %v1150 = vunpack.c.l.b16 %v1116
        %v1151 = vunpack.c.l.b16 %v1117
        %v1152 = vunpack.c.l.b16 %v1118
        %v1153 = vunpack.c.l.b16 %v1119
        %v1154 = vunpack.c.l.b16 %v1120
        %v1155 = vunpack.c.l.b16 %v1121
        %v1156 = vunpack.c.l.b16 %v1122
        %v1157 = vunpack.c.l.b16 %v1123
        %v1158 = vunpack.c.l.b16 %v1124
        %v1159 = vunpack.c.l.b16 %v1125
        %v1160 = vunpack.c.l.b16 %v1126
        %v1161 = vunpack.c.l.b16 %v1127
        %v1162 = vpack.c.b16 %v1147, %v1146
        %v1163 = vpack.c.b16 %v1149, %v1148
        %v1164 = vpack.c.b16 %v1151, %v1150
        %v1165 = vpack.c.b16 %v1153, %v1152
        %v1166 = vpack.c.b16 %v1155, %v1154
        %v1167 = vpack.c.b16 %v1157, %v1156
        %v1168 = vpack.c.b16 %v1159, %v1158
        %v1169 = vpack.c.b16 %v1161, %v1160
        %v1172 = vunpack.c.l.b16 %v1128
        %v1173 = vunpack.c.h.b16 %v1128
        %v1174 = vunpack.c.l.b16 %v1129
        %v1175 = vunpack.c.h.b16 %v1129
        %v1176 = vpack.c.b16 %v1172, %v1172
        %v1177 = vpack.c.b16 %v1173, %v1173
        %v1178 = vpack.c.b16 %v1174, %v1174
        %v1179 = vpack.c.b16 %v1175, %v1175
        %vm1180 = vcmask 64512
        %v1182 = vsel %vm1180, %v1162, 0
        %v1185 = vsel %vm1180, %v1163, 0
        %v1188 = vsel %vm1180, %v1164, 0
        %v1191 = vsel %vm1180, %v1165, 0
        %v1194 = vsel %vm1180, %v1166, 0
        %v1197 = vsel %vm1180, %v1167, 0
        %v1200 = vsel %vm1180, %v1168, 0
        %v1203 = vsel %vm1180, %v1169, 0
        %v1206 = vsel %vm605, %v1176, 0
        %v1209 = vsel %vm605, %v1177, 0
        %v1212 = vsel %vm605, %v1178, 0
        %v1215 = vsel %vm605, %v1179, 0
        %1217 = vmatprep.subr.bf16.mxu0 %v1209
        %1218 = vmatpush1.bf16.msra.mxu0 %v1206
        %1219 = vmatprep.subr.bf16.mxu0 0
        %1220 = vmatpush1.bf16.msra.mxu0 0
        %1221 = vmatprep.subr.bf16.mxu0 0
        %1222 = vmatpush1.bf16.msra.mxu0 0
        %1223 = vmatprep.subr.bf16.mxu0 0
        %1224 = vmatpush1.bf16.msra.mxu0 0
        %1225 = vmatprep.subr.bf16.mxu0 0
        %1226 = vmatpush1.bf16.msra.mxu0 0
        %1227 = vmatprep.subr.bf16.mxu0 0
        %1228 = vmatpush1.bf16.msra.mxu0 0
        %1229 = vmatprep.subr.bf16.mxu0 0
        %1230 = vmatpush1.bf16.msra.mxu0 0
        %1231 = vmatprep.subr.bf16.mxu0 0
        %1232 = vmatpush1.bf16.msra.mxu0 0
        %1233 = vmatprep.subr.bf16.mxu0 0
        %1234 = vmatpush1.bf16.msra.mxu0 0
        %1235 = vmatprep.subr.bf16.mxu0 0
        %1236 = vmatpush1.bf16.msra.mxu0 0
        %1237 = vmatprep.subr.bf16.mxu0 0
        %1238 = vmatpush1.bf16.msra.mxu0 0
        %1239 = vmatprep.subr.bf16.mxu0 0
        %1240 = vmatpush1.bf16.msra.mxu0 0
        %1241 = vmatprep.subr.bf16.mxu0 0
        %1242 = vmatpush1.bf16.msra.mxu0 0
        %1243 = vmatprep.subr.bf16.mxu0 0
        %1244 = vmatpush1.bf16.msra.mxu0 0
        %1245 = vmatprep.subr.bf16.mxu0 0
        %1246 = vmatpush1.bf16.msra.mxu0 0
        %1247 = vmatprep.subr.bf16.mxu0 0
        %1248 = vmatpush1.bf16.msra.mxu0 0
        %1249 = vmatprep.mubr.bf16.mxu0 0
        %1250 = vmatmul.mubr.bf16.gmra.mrb[0].mxu0 %v1182
        %v1251 = vpop.f32.mrb[0].mxu0
        %v1252 = vadd.f32 0.0, %v1251
        %v1253 = vpop.f32.mrb[0].mxu0
        %v1254 = vadd.f32 0.0, %v1253
        %v1255 = vpop.f32.mrb[0].mxu0
        %v1256 = vadd.f32 0.0, %v1255
        %v1257 = vpop.f32.mrb[0].mxu0
        %v1258 = vadd.f32 0.0, %v1257
        %1259 = vmatprep.mubr.bf16.mxu0 0
        %1260 = vmatmul.mubr.bf16.gmra.mrb[0].mxu0 %v1185
        %v1261 = vpop.f32.mrb[0].mxu0
        %v1262 = vadd.f32 0.0, %v1261
        %v1263 = vpop.f32.mrb[0].mxu0
        %v1264 = vadd.f32 0.0, %v1263
        %v1265 = vpop.f32.mrb[0].mxu0
        %v1266 = vadd.f32 0.0, %v1265
        %v1267 = vpop.f32.mrb[0].mxu0
        %v1268 = vadd.f32 0.0, %v1267
        %1269 = vmatprep.mubr.bf16.mxu0 0
        %1270 = vmatmul.mubr.bf16.gmra.mrb[0].mxu0 %v1188
        %v1271 = vpop.f32.mrb[0].mxu0
        %v1272 = vadd.f32 0.0, %v1271
        %v1273 = vpop.f32.mrb[0].mxu0
        %v1274 = vadd.f32 0.0, %v1273
        %v1275 = vpop.f32.mrb[0].mxu0
        %v1276 = vadd.f32 0.0, %v1275
        %v1277 = vpop.f32.mrb[0].mxu0
        %v1278 = vadd.f32 0.0, %v1277
        %1279 = vmatprep.mubr.bf16.mxu0 0
        %1280 = vmatmul.mubr.bf16.gmra.mrb[0].mxu0 %v1191
        %v1281 = vpop.f32.mrb[0].mxu0
        %v1282 = vadd.f32 0.0, %v1281
        %v1283 = vpop.f32.mrb[0].mxu0
        %v1284 = vadd.f32 0.0, %v1283
        %v1285 = vpop.f32.mrb[0].mxu0
        %v1286 = vadd.f32 0.0, %v1285
        %v1287 = vpop.f32.mrb[0].mxu0
        %v1288 = vadd.f32 0.0, %v1287
        %1289 = vmatprep.mubr.bf16.mxu0 0
        %1290 = vmatmul.mubr.bf16.gmra.mrb[0].mxu0 %v1194
        %v1291 = vpop.f32.mrb[0].mxu0
        %v1292 = vadd.f32 0.0, %v1291
        %v1293 = vpop.f32.mrb[0].mxu0
        %v1294 = vadd.f32 0.0, %v1293
        %v1295 = vpop.f32.mrb[0].mxu0
        %v1296 = vadd.f32 0.0, %v1295
        %v1297 = vpop.f32.mrb[0].mxu0
        %v1298 = vadd.f32 0.0, %v1297
        %1299 = vmatprep.mubr.bf16.mxu0 0
        %1300 = vmatmul.mubr.bf16.gmra.mrb[0].mxu0 %v1197
        %v1301 = vpop.f32.mrb[0].mxu0
        %v1302 = vadd.f32 0.0, %v1301
        %v1303 = vpop.f32.mrb[0].mxu0
        %v1304 = vadd.f32 0.0, %v1303
        %v1305 = vpop.f32.mrb[0].mxu0
        %v1306 = vadd.f32 0.0, %v1305
        %v1307 = vpop.f32.mrb[0].mxu0
        %v1308 = vadd.f32 0.0, %v1307
        %1309 = vmatprep.mubr.bf16.mxu0 0
        %1310 = vmatmul.mubr.bf16.gmra.mrb[0].mxu0 %v1200
        %v1311 = vpop.f32.mrb[0].mxu0
        %v1312 = vadd.f32 0.0, %v1311
        %v1313 = vpop.f32.mrb[0].mxu0
        %v1314 = vadd.f32 0.0, %v1313
        %v1315 = vpop.f32.mrb[0].mxu0
        %v1316 = vadd.f32 0.0, %v1315
        %v1317 = vpop.f32.mrb[0].mxu0
        %v1318 = vadd.f32 0.0, %v1317
        %1319 = vmatprep.mubr.bf16.mxu0 0
        %1320 = vmatmul.mubr.bf16.gmra.mrb[0].mxu0 %v1203
        %v1321 = vpop.f32.mrb[0].mxu0
        %v1322 = vadd.f32 0.0, %v1321
        %v1323 = vpop.f32.mrb[0].mxu0
        %v1324 = vadd.f32 0.0, %v1323
        %v1325 = vpop.f32.mrb[0].mxu0
        %v1326 = vadd.f32 0.0, %v1325
        %v1327 = vpop.f32.mrb[0].mxu0
        %v1328 = vadd.f32 0.0, %v1327
        %1329 = vdwg.mxu0
        %1330 = vmatprep.subr.bf16.mxu0 %v1215
        %1331 = vmatpush1.bf16.msra.mxu0 %v1212
        %1332 = vmatprep.subr.bf16.mxu0 0
        %1333 = vmatpush1.bf16.msra.mxu0 0
        %1334 = vmatprep.subr.bf16.mxu0 0
        %1335 = vmatpush1.bf16.msra.mxu0 0
        %1336 = vmatprep.subr.bf16.mxu0 0
        %1337 = vmatpush1.bf16.msra.mxu0 0
        %1338 = vmatprep.subr.bf16.mxu0 0
        %1339 = vmatpush1.bf16.msra.mxu0 0
        %1340 = vmatprep.subr.bf16.mxu0 0
        %1341 = vmatpush1.bf16.msra.mxu0 0
        %1342 = vmatprep.subr.bf16.mxu0 0
        %1343 = vmatpush1.bf16.msra.mxu0 0
        %1344 = vmatprep.subr.bf16.mxu0 0
        %1345 = vmatpush1.bf16.msra.mxu0 0
        %1346 = vmatprep.subr.bf16.mxu0 0
        %1347 = vmatpush1.bf16.msra.mxu0 0
        %1348 = vmatprep.subr.bf16.mxu0 0
        %1349 = vmatpush1.bf16.msra.mxu0 0
        %1350 = vmatprep.subr.bf16.mxu0 0
        %1351 = vmatpush1.bf16.msra.mxu0 0
        %1352 = vmatprep.subr.bf16.mxu0 0
        %1353 = vmatpush1.bf16.msra.mxu0 0
        %1354 = vmatprep.subr.bf16.mxu0 0
        %1355 = vmatpush1.bf16.msra.mxu0 0
        %1356 = vmatprep.subr.bf16.mxu0 0
        %1357 = vmatpush1.bf16.msra.mxu0 0
        %1358 = vmatprep.subr.bf16.mxu0 0
        %1359 = vmatpush1.bf16.msra.mxu0 0
        %1360 = vmatprep.subr.bf16.mxu0 0
        %1361 = vmatpush1.bf16.msra.mxu0 0
        %1362 = vmatprep.mubr.bf16.mxu0 0
        %1363 = vmatmul.mubr.bf16.gmra.mrb[0].mxu0 %v1182
        %v1364 = vpop.f32.mrb[0].mxu0
        %v1365 = vadd.f32 0.0, %v1364
        %v1366 = vpop.f32.mrb[0].mxu0
        %v1367 = vadd.f32 0.0, %v1366
        %v1368 = vpop.f32.mrb[0].mxu0
        %v1369 = vadd.f32 0.0, %v1368
        %v1370 = vpop.f32.mrb[0].mxu0
        %v1371 = vadd.f32 0.0, %v1370
        %1372 = vmatprep.mubr.bf16.mxu0 0
        %1373 = vmatmul.mubr.bf16.gmra.mrb[0].mxu0 %v1185
        %v1374 = vpop.f32.mrb[0].mxu0
        %v1375 = vadd.f32 0.0, %v1374
        %v1376 = vpop.f32.mrb[0].mxu0
        %v1377 = vadd.f32 0.0, %v1376
        %v1378 = vpop.f32.mrb[0].mxu0
        %v1379 = vadd.f32 0.0, %v1378
        %v1380 = vpop.f32.mrb[0].mxu0
        %v1381 = vadd.f32 0.0, %v1380
        %1382 = vmatprep.mubr.bf16.mxu0 0
        %1383 = vmatmul.mubr.bf16.gmra.mrb[0].mxu0 %v1188
        %v1384 = vpop.f32.mrb[0].mxu0
        %v1385 = vadd.f32 0.0, %v1384
        %v1386 = vpop.f32.mrb[0].mxu0
        %v1387 = vadd.f32 0.0, %v1386
        %v1388 = vpop.f32.mrb[0].mxu0
        %v1389 = vadd.f32 0.0, %v1388
        %v1390 = vpop.f32.mrb[0].mxu0
        %v1391 = vadd.f32 0.0, %v1390
        %1392 = vmatprep.mubr.bf16.mxu0 0
        %1393 = vmatmul.mubr.bf16.gmra.mrb[0].mxu0 %v1191
        %v1394 = vpop.f32.mrb[0].mxu0
        %v1395 = vadd.f32 0.0, %v1394
        %v1396 = vpop.f32.mrb[0].mxu0
        %v1397 = vadd.f32 0.0, %v1396
        %v1398 = vpop.f32.mrb[0].mxu0
        %v1399 = vadd.f32 0.0, %v1398
        %v1400 = vpop.f32.mrb[0].mxu0
        %v1401 = vadd.f32 0.0, %v1400
        %1402 = vmatprep.mubr.bf16.mxu0 0
        %1403 = vmatmul.mubr.bf16.gmra.mrb[0].mxu0 %v1194
        %v1404 = vpop.f32.mrb[0].mxu0
        %v1405 = vadd.f32 0.0, %v1404
        %v1406 = vpop.f32.mrb[0].mxu0
        %v1407 = vadd.f32 0.0, %v1406
        %v1408 = vpop.f32.mrb[0].mxu0
        %v1409 = vadd.f32 0.0, %v1408
        %v1410 = vpop.f32.mrb[0].mxu0
        %v1411 = vadd.f32 0.0, %v1410
        %1412 = vmatprep.mubr.bf16.mxu0 0
        %1413 = vmatmul.mubr.bf16.gmra.mrb[0].mxu0 %v1197
        %v1414 = vpop.f32.mrb[0].mxu0
        %v1415 = vadd.f32 0.0, %v1414
        %v1416 = vpop.f32.mrb[0].mxu0
        %v1417 = vadd.f32 0.0, %v1416
        %v1418 = vpop.f32.mrb[0].mxu0
        %v1419 = vadd.f32 0.0, %v1418
        %v1420 = vpop.f32.mrb[0].mxu0
        %v1421 = vadd.f32 0.0, %v1420
        %1422 = vmatprep.mubr.bf16.mxu0 0
        %1423 = vmatmul.mubr.bf16.gmra.mrb[0].mxu0 %v1200
        %v1424 = vpop.f32.mrb[0].mxu0
        %v1425 = vadd.f32 0.0, %v1424
        %v1426 = vpop.f32.mrb[0].mxu0
        %v1427 = vadd.f32 0.0, %v1426
        %v1428 = vpop.f32.mrb[0].mxu0
        %v1429 = vadd.f32 0.0, %v1428
        %v1430 = vpop.f32.mrb[0].mxu0
        %v1431 = vadd.f32 0.0, %v1430
        %1432 = vmatprep.mubr.bf16.mxu0 0
        %1433 = vmatmul.mubr.bf16.gmra.mrb[0].mxu0 %v1203
        %v1434 = vpop.f32.mrb[0].mxu0
        %v1435 = vadd.f32 0.0, %v1434
        %v1436 = vpop.f32.mrb[0].mxu0
        %v1437 = vadd.f32 0.0, %v1436
        %v1438 = vpop.f32.mrb[0].mxu0
        %v1439 = vadd.f32 0.0, %v1438
        %v1440 = vpop.f32.mrb[0].mxu0
        %v1441 = vadd.f32 0.0, %v1440
        %1442 = vdwg.mxu0
        %v1443 = vlaneseq
        %v1444 = vshrl.u32 %v1443, 7
        %v1445 = vsub.s32 0, %v1444
        %v1446 = vrot.slane %v1108, %v1445
        %v1447 = vlaneseq
        %v1448 = vshrl.u32 %v1447, 7
        %v1449 = vsub.s32 0, %v1448
        %v1450 = vrot.slane %v1109, %v1449
        %v1451 = vlaneseq
        %v1452 = vshrl.u32 %v1451, 7
        %v1453 = vsub.s32 0, %v1452
        %v1454 = vrot.slane %v1110, %v1453
        %v1455 = vlaneseq
        %v1456 = vshrl.u32 %v1455, 7
        %v1457 = vsub.s32 0, %v1456
        %v1458 = vrot.slane %v1111, %v1457
        %v1459 = vmul.f32 %v1446, %v1252
        %v1460 = vmul.f32 %v1450, %v1254
        %v1461 = vmul.f32 %v1454, %v1365
        %v1462 = vmul.f32 %v1458, %v1367
        %v1463 = vmul.f32 %v1446, %v1256
        %v1464 = vmul.f32 %v1450, %v1258
        %v1465 = vmul.f32 %v1454, %v1369
        %v1466 = vmul.f32 %v1458, %v1371
        %v1467 = vlaneseq
        %v1468 = vshrl.u32 %v1467, 7
        %v1469 = vsub.s32 1, %v1468
        %v1470 = vrot.slane %v1108, %v1469
        %v1471 = vlaneseq
        %v1472 = vshrl.u32 %v1471, 7
        %v1473 = vsub.s32 1, %v1472
        %v1474 = vrot.slane %v1109, %v1473
        %v1475 = vlaneseq
        %v1476 = vshrl.u32 %v1475, 7
        %v1477 = vsub.s32 1, %v1476
        %v1478 = vrot.slane %v1110, %v1477
        %v1479 = vlaneseq
        %v1480 = vshrl.u32 %v1479, 7
        %v1481 = vsub.s32 1, %v1480
        %v1482 = vrot.slane %v1111, %v1481
        %v1483 = vmul.f32 %v1470, %v1262
        %v1484 = vmul.f32 %v1474, %v1264
        %v1485 = vmul.f32 %v1478, %v1375
        %v1486 = vmul.f32 %v1482, %v1377
        %v1487 = vmul.f32 %v1470, %v1266
        %v1488 = vmul.f32 %v1474, %v1268
        %v1489 = vmul.f32 %v1478, %v1379
        %v1490 = vmul.f32 %v1482, %v1381
        %v1491 = vadd.f32 %v1459, %v1483
        %v1492 = vadd.f32 %v1460, %v1484
        %v1493 = vadd.f32 %v1461, %v1485
        %v1494 = vadd.f32 %v1462, %v1486
        %v1495 = vadd.f32 %v1463, %v1487
        %v1496 = vadd.f32 %v1464, %v1488
        %v1497 = vadd.f32 %v1465, %v1489
        %v1498 = vadd.f32 %v1466, %v1490
        %v1499 = vlaneseq
        %v1500 = vshrl.u32 %v1499, 7
        %v1501 = vsub.s32 2, %v1500
        %v1502 = vrot.slane %v1108, %v1501
        %v1503 = vlaneseq
        %v1504 = vshrl.u32 %v1503, 7
        %v1505 = vsub.s32 2, %v1504
        %v1506 = vrot.slane %v1109, %v1505
        %v1507 = vlaneseq
        %v1508 = vshrl.u32 %v1507, 7
        %v1509 = vsub.s32 2, %v1508
        %v1510 = vrot.slane %v1110, %v1509
        %v1511 = vlaneseq
        %v1512 = vshrl.u32 %v1511, 7
        %v1513 = vsub.s32 2, %v1512
        %v1514 = vrot.slane %v1111, %v1513
        %v1515 = vmul.f32 %v1502, %v1272
        %v1516 = vmul.f32 %v1506, %v1274
        %v1517 = vmul.f32 %v1510, %v1385
        %v1518 = vmul.f32 %v1514, %v1387
        %v1519 = vmul.f32 %v1502, %v1276
        %v1520 = vmul.f32 %v1506, %v1278
        %v1521 = vmul.f32 %v1510, %v1389
        %v1522 = vmul.f32 %v1514, %v1391
        %v1523 = vadd.f32 %v1491, %v1515
        %v1524 = vadd.f32 %v1492, %v1516
        %v1525 = vadd.f32 %v1493, %v1517
        %v1526 = vadd.f32 %v1494, %v1518
        %v1527 = vadd.f32 %v1495, %v1519
        %v1528 = vadd.f32 %v1496, %v1520
        %v1529 = vadd.f32 %v1497, %v1521
        %v1530 = vadd.f32 %v1498, %v1522
        %v1531 = vlaneseq
        %v1532 = vshrl.u32 %v1531, 7
        %v1533 = vsub.s32 3, %v1532
        %v1534 = vrot.slane %v1108, %v1533
        %v1535 = vlaneseq
        %v1536 = vshrl.u32 %v1535, 7
        %v1537 = vsub.s32 3, %v1536
        %v1538 = vrot.slane %v1109, %v1537
        %v1539 = vlaneseq
        %v1540 = vshrl.u32 %v1539, 7
        %v1541 = vsub.s32 3, %v1540
        %v1542 = vrot.slane %v1110, %v1541
        %v1543 = vlaneseq
        %v1544 = vshrl.u32 %v1543, 7
        %v1545 = vsub.s32 3, %v1544
        %v1546 = vrot.slane %v1111, %v1545
        %v1547 = vmul.f32 %v1534, %v1282
        %v1548 = vmul.f32 %v1538, %v1284
        %v1549 = vmul.f32 %v1542, %v1395
        %v1550 = vmul.f32 %v1546, %v1397
        %v1551 = vmul.f32 %v1534, %v1286
        %v1552 = vmul.f32 %v1538, %v1288
        %v1553 = vmul.f32 %v1542, %v1399
        %v1554 = vmul.f32 %v1546, %v1401
        %v1555 = vadd.f32 %v1523, %v1547
        %v1556 = vadd.f32 %v1524, %v1548
        %v1557 = vadd.f32 %v1525, %v1549
        %v1558 = vadd.f32 %v1526, %v1550
        %v1559 = vadd.f32 %v1527, %v1551
        %v1560 = vadd.f32 %v1528, %v1552
        %v1561 = vadd.f32 %v1529, %v1553
        %v1562 = vadd.f32 %v1530, %v1554
        %v1563 = vlaneseq
        %v1564 = vshrl.u32 %v1563, 7
        %v1565 = vsub.s32 4, %v1564
        %v1566 = vrot.slane %v1108, %v1565
        %v1567 = vlaneseq
        %v1568 = vshrl.u32 %v1567, 7
        %v1569 = vsub.s32 4, %v1568
        %v1570 = vrot.slane %v1109, %v1569
        %v1571 = vlaneseq
        %v1572 = vshrl.u32 %v1571, 7
        %v1573 = vsub.s32 4, %v1572
        %v1574 = vrot.slane %v1110, %v1573
        %v1575 = vlaneseq
        %v1576 = vshrl.u32 %v1575, 7
        %v1577 = vsub.s32 4, %v1576
        %v1578 = vrot.slane %v1111, %v1577
        %v1579 = vmul.f32 %v1566, %v1292
        %v1580 = vmul.f32 %v1570, %v1294
        %v1581 = vmul.f32 %v1574, %v1405
        %v1582 = vmul.f32 %v1578, %v1407
        %v1583 = vmul.f32 %v1566, %v1296
        %v1584 = vmul.f32 %v1570, %v1298
        %v1585 = vmul.f32 %v1574, %v1409
        %v1586 = vmul.f32 %v1578, %v1411
        %v1587 = vadd.f32 %v1555, %v1579
        %v1588 = vadd.f32 %v1556, %v1580
        %v1589 = vadd.f32 %v1557, %v1581
        %v1590 = vadd.f32 %v1558, %v1582
        %v1591 = vadd.f32 %v1559, %v1583
        %v1592 = vadd.f32 %v1560, %v1584
        %v1593 = vadd.f32 %v1561, %v1585
        %v1594 = vadd.f32 %v1562, %v1586
        %v1595 = vlaneseq
        %v1596 = vshrl.u32 %v1595, 7
        %v1597 = vsub.s32 5, %v1596
        %v1598 = vrot.slane %v1108, %v1597
        %v1599 = vlaneseq
        %v1600 = vshrl.u32 %v1599, 7
        %v1601 = vsub.s32 5, %v1600
        %v1602 = vrot.slane %v1109, %v1601
        %v1603 = vlaneseq
        %v1604 = vshrl.u32 %v1603, 7
        %v1605 = vsub.s32 5, %v1604
        %v1606 = vrot.slane %v1110, %v1605
        %v1607 = vlaneseq
        %v1608 = vshrl.u32 %v1607, 7
        %v1609 = vsub.s32 5, %v1608
        %v1610 = vrot.slane %v1111, %v1609
        %v1611 = vmul.f32 %v1598, %v1302
        %v1612 = vmul.f32 %v1602, %v1304
        %v1613 = vmul.f32 %v1606, %v1415
        %v1614 = vmul.f32 %v1610, %v1417
        %v1615 = vmul.f32 %v1598, %v1306
        %v1616 = vmul.f32 %v1602, %v1308
        %v1617 = vmul.f32 %v1606, %v1419
        %v1618 = vmul.f32 %v1610, %v1421
        %v1619 = vadd.f32 %v1587, %v1611
        %v1620 = vadd.f32 %v1588, %v1612
        %v1621 = vadd.f32 %v1589, %v1613
        %v1622 = vadd.f32 %v1590, %v1614
        %v1623 = vadd.f32 %v1591, %v1615
        %v1624 = vadd.f32 %v1592, %v1616
        %v1625 = vadd.f32 %v1593, %v1617
        %v1626 = vadd.f32 %v1594, %v1618
        %v1627 = vlaneseq
        %v1628 = vshrl.u32 %v1627, 7
        %v1629 = vsub.s32 6, %v1628
        %v1630 = vrot.slane %v1108, %v1629
        %v1631 = vlaneseq
        %v1632 = vshrl.u32 %v1631, 7
        %v1633 = vsub.s32 6, %v1632
        %v1634 = vrot.slane %v1109, %v1633
        %v1635 = vlaneseq
        %v1636 = vshrl.u32 %v1635, 7
        %v1637 = vsub.s32 6, %v1636
        %v1638 = vrot.slane %v1110, %v1637
        %v1639 = vlaneseq
        %v1640 = vshrl.u32 %v1639, 7
        %v1641 = vsub.s32 6, %v1640
        %v1642 = vrot.slane %v1111, %v1641
        %v1643 = vmul.f32 %v1630, %v1312
        %v1644 = vmul.f32 %v1634, %v1314
        %v1645 = vmul.f32 %v1638, %v1425
        %v1646 = vmul.f32 %v1642, %v1427
        %v1647 = vmul.f32 %v1630, %v1316
        %v1648 = vmul.f32 %v1634, %v1318
        %v1649 = vmul.f32 %v1638, %v1429
        %v1650 = vmul.f32 %v1642, %v1431
        %v1651 = vadd.f32 %v1619, %v1643
        %v1652 = vadd.f32 %v1620, %v1644
        %v1653 = vadd.f32 %v1621, %v1645
        %v1654 = vadd.f32 %v1622, %v1646
        %v1655 = vadd.f32 %v1623, %v1647
        %v1656 = vadd.f32 %v1624, %v1648
        %v1657 = vadd.f32 %v1625, %v1649
        %v1658 = vadd.f32 %v1626, %v1650
        %v1659 = vlaneseq
        %v1660 = vshrl.u32 %v1659, 7
        %v1661 = vsub.s32 7, %v1660
        %v1662 = vrot.slane %v1108, %v1661
        %v1663 = vlaneseq
        %v1664 = vshrl.u32 %v1663, 7
        %v1665 = vsub.s32 7, %v1664
        %v1666 = vrot.slane %v1109, %v1665
        %v1667 = vlaneseq
        %v1668 = vshrl.u32 %v1667, 7
        %v1669 = vsub.s32 7, %v1668
        %v1670 = vrot.slane %v1110, %v1669
        %v1671 = vlaneseq
        %v1672 = vshrl.u32 %v1671, 7
        %v1673 = vsub.s32 7, %v1672
        %v1674 = vrot.slane %v1111, %v1673
        %v1675 = vmul.f32 %v1662, %v1322
        %v1676 = vmul.f32 %v1666, %v1324
        %v1677 = vmul.f32 %v1670, %v1435
        %v1678 = vmul.f32 %v1674, %v1437
        %v1679 = vmul.f32 %v1662, %v1326
        %v1680 = vmul.f32 %v1666, %v1328
        %v1681 = vmul.f32 %v1670, %v1439
        %v1682 = vmul.f32 %v1674, %v1441
        %v1683 = vadd.f32 %v1651, %v1675
        %v1684 = vadd.f32 %v1652, %v1676
        %v1685 = vadd.f32 %v1653, %v1677
        %v1686 = vadd.f32 %v1654, %v1678
        %v1687 = vadd.f32 %v1655, %v1679
        %v1688 = vadd.f32 %v1656, %v1680
        %v1689 = vadd.f32 %v1657, %v1681
        %v1690 = vadd.f32 %v1658, %v1682
        %v1691 = vld [vmem:[%s8] sm:$0xff]
        %v1692 = vld [vmem:[%s8 + $0x8] sm:$0xff]
        %1694 = vset.pattern.permute.xlu0 0
        %1695 = vperm.xlu0 %1694, %v1691
        %v1696 = vpop.permute.xlu0 %1695
        %1699 = vset.pattern.permute.xlu0 0
        %1700 = vperm.xlu0 %1699, %v1692
        %v1701 = vpop.permute.xlu0 %1700
        %v1703 = vmul.f32 %v1683, %v1696
        %v1704 = vmul.f32 %v1684, %v1696
        %v1705 = vmul.f32 %v1685, %v1696
        %v1706 = vmul.f32 %v1686, %v1696
        %v1707 = vmul.f32 %v1687, %v1701
        %v1708 = vmul.f32 %v1688, %v1701
        %v1709 = vmul.f32 %v1689, %v1701
        %v1710 = vmul.f32 %v1690, %v1701
        %v1711 = vld [vmem:[%s9] sm:$0xff]
        %v1712 = vld [vmem:[%s9 + $0x8] sm:$0xff]
        %1714 = vset.pattern.permute.xlu0 0
        %1715 = vperm.xlu0 %1714, %v1711
        %v1716 = vpop.permute.xlu0 %1715
        %1719 = vset.pattern.permute.xlu0 0
        %1720 = vperm.xlu0 %1719, %v1712
        %v1721 = vpop.permute.xlu0 %1720
        %v1723 = vadd.f32 %v1703, %v1716
        %v1724 = vadd.f32 %v1704, %v1716
        %v1725 = vadd.f32 %v1705, %v1716
        %v1726 = vadd.f32 %v1706, %v1716
        %v1727 = vadd.f32 %v1707, %v1721
        %v1728 = vadd.f32 %v1708, %v1721
        %v1729 = vadd.f32 %v1709, %v1721
        %v1730 = vadd.f32 %v1710, %v1721
        %v1731 = vmax.f32 %v1723, 0.0
        %v1732 = vmax.f32 %v1724, 0.0
        %v1733 = vmax.f32 %v1725, 0.0
        %v1734 = vmax.f32 %v1726, 0.0
        %v1735 = vmax.f32 %v1727, 0.0
        %v1736 = vmax.f32 %v1728, 0.0
        %v1737 = vmax.f32 %v1729, 0.0
        %v1738 = vmax.f32 %v1730, 0.0
        %1739 = vst [vmem:[%s393] sm:$0xff] %v1731
        %1740 = vst [vmem:[%s393 + $0x8] sm:$0xff] %v1732
        %1741 = vst [vmem:[%s393 + $0x10] sm:$0xff] %v1733
        %1742 = vst [vmem:[%s393 + $0x18] sm:$0xff] %v1734
        %1743 = vst [vmem:[%s393 + $0x20] sm:$0xff] %v1735
        %1744 = vst [vmem:[%s393 + $0x28] sm:$0xff] %v1736
        %1745 = vst [vmem:[%s393 + $0x30] sm:$0xff] %v1737
        %1746 = vst [vmem:[%s393 + $0x38] sm:$0xff] %v1738
        %s1747 = sand.u32 %s255, 1
        %s1748 = scalar_lea.sflag [#allocation4], %s1747
        %s1749 = sand.u32 %s255, 1
        %s1750 = smul.addr %s1749, 64
        %s1751 = scalar_lea.vmem [#allocation5], %s1750
        // Predicated region
        $region65: #{tpu_custom_call.1} parent=59 // pred_check
          %p1752 = pneg %p265
        $region66: #{tpu_custom_call.1} parent=59 // pred_check_branch
          %1754 = sbr.rel (%p1752) target = $region68
        $region67: #{tpu_custom_call.1} parent=59 // pred_region
          %s1755 = smul.u32 4, %s27
          %s1757 = ssub.s32 1024, 1024
          %1758 = vsyncadd %s1748, %s1757
          %s1759 = smul.addr %s1755, 128
          %s1760 = scalar_lea.hbm %s10, %s1759
          %s1761 = sshll.u32 %s1751, 4
          %s1762 = int_to_ptr.vmem [resolvable:$true] %s1761
          %1767 = dma.vmem_to_hbm [thread:$0]  %s1762, 1024, %s1760, %s1748, 512, 2048, 32
        $region68: #{tpu_custom_call.1} parent=59 // pred_fallthru
          _
      $region60: #{tpu_custom_call.1} parent=5 // pred_fallthru
        _
      %p1768 = scmp.le.s32.totalorder 2, %s22
      // Predicated region
      $region69: #{tpu_custom_call.1} parent=5 // pred_check
        %p1769 = pneg %p1768
      $region70: #{tpu_custom_call.1} parent=5 // pred_check_branch
        %1771 = sbr.rel (%p1769) target = $region72
      $region71: #{tpu_custom_call.1} parent=5 // pred_region
        %s1772 = ssub.s32 %s22, 2
        // Predicated region
        $region73: #{tpu_custom_call.1} parent=71 // pred_check
          %p1773 = pneg %p271
        $region74: #{tpu_custom_call.1} parent=71 // pred_check_branch
          %1775 = sbr.rel (%p1773) target = $region76
        $region75: #{tpu_custom_call.1} parent=71 // pred_region
          %s1776 = sand.u32 %s256, 1
          %s1777 = scalar_lea.sflag [#allocation4], %s1776
          %s1778 = sand.u32 %s256, 1
          %s1779 = smul.addr %s1778, 64
          %s1780 = scalar_lea.vmem [#allocation5], %s1779
          %1781 = dma.done %s1777, 1024
        $region76: #{tpu_custom_call.1} parent=71 // pred_fallthru
          _
      $region72: #{tpu_custom_call.1} parent=5 // pred_fallthru
        _
    $region6: #{tpu_custom_call.1} parent=1 // loop_footer
      %s26 = sadd.s32 1, %s22
    $region7: #{tpu_custom_call.1} parent=1 // loop_footer_branch
      %21 = sbr.rel target = $region3
    $region8: #{tpu_custom_call.1} parent=1 // loop_exit
      _
    %1782 = vsyncpa [#allocation3], 1
    %s1783 = scalar_lea.sflag [#allocation3], 1
    %1784 = vsyncpa %s1783, 1
    %1785 = vsyncpa [#allocation4], 1
    %s1786 = scalar_lea.sflag [#allocation4], 1
    %1787 = vsyncpa %s1786, 1

</llo_original>
